<compile_context>
chip_gen: v7x
topology: tpu7x:2x2x1
jax: 0.10.0
libtpu: 0.0.40
codegen_flags: <defaults>
</compile_context>

<pallas_src>
import jax
import jax.numpy as jnp
from jax import lax
from jax.experimental import pallas as pl
from jax.experimental.pallas import tpu as pltpu

EPS = 1e-5


def _stream_layer(act_ref, w_hbm, wbuf, sems, sem_row,
                  gamma_ref, beta_ref, out_ref, *, relu, affine,
                  prime_next=None):
    """out = BN(act @ W)[, ReLU], streaming pre-tiled W from HBM.

    w_hbm: (n_tiles, K, tn) bf16 HBM ref (contiguous per output-column tile).
    Assumes tile 0's DMA into wbuf[0] was already started by the caller.
    On the last tile, calls `prime_next()` (starts next layer's tile-0 DMA).
    """
    n_tiles, _, tn = w_hbm.shape

    def w_copy(j, slot):
        return pltpu.make_async_copy(w_hbm.at[j], wbuf.at[slot],
                                     sems.at[sem_row, slot])

    # Static unroll: n_tiles is a small Python int, so the scheduler sees
    # across tile boundaries (tile j's BN epilogue hides under tile j+1's
    # matmul; DMA waits/starts interleave with MXU pushes).
    for j in range(n_tiles):
        slot = j & 1
        w_copy(j, slot).wait()

        if j + 1 < n_tiles:
            # Prefetch this layer's next weight tile.
            w_copy(j + 1, 1 - slot).start()
        elif prime_next is not None:
            # Cross-layer prefetch: hide the next layer's first weight DMA
            # under this layer's last tile of compute.
            prime_next()

        # MXU: bf16 x bf16 -> f32 accumulate.
        h = jnp.dot(act_ref[...], wbuf[slot],
                    preferred_element_type=jnp.float32)          # (N, tn) f32

        # BatchNorm (training mode, biased variance) over the batch axis,
        # folded into a single scale/shift FMA; math stays f32.
        mean = jnp.mean(h, axis=0, keepdims=True)
        d = h - mean
        var = jnp.mean(d * d, axis=0, keepdims=True)
        inv = lax.rsqrt(var + EPS)

        col = slice(j * tn, (j + 1) * tn)                        # static slice
        if affine:
            y = d * (gamma_ref[:, col] * inv) + beta_ref[:, col]
        else:
            y = d * inv
        if relu:
            y = jnp.maximum(y, 0.0)
        out_ref[:, col] = y.astype(out_ref.dtype)


def projector_mlp_kernel(x_ref, g1_ref, b1_ref, g2_ref, b2_ref,
                         w1_hbm, w2_hbm, w3_hbm,
                         o_ref,
                         h1_ref, h2_ref, wbuf1, wbuf2, wbuf3, sems):
    def tile0_copy(w_hbm, wbuf, row):
        return pltpu.make_async_copy(w_hbm.at[0], wbuf.at[0], sems.at[row, 0])

    # Prime layer 1, tile 0.
    tile0_copy(w1_hbm, wbuf1, 0).start()

    # Layer 1: Linear -> BN(affine) -> ReLU
    _stream_layer(x_ref, w1_hbm, wbuf1, sems, 0, g1_ref, b1_ref, h1_ref,
                  relu=True, affine=True,
                  prime_next=lambda: tile0_copy(w2_hbm, wbuf2, 1).start())
    # Layer 2: Linear -> BN(affine) -> ReLU
    _stream_layer(h1_ref, w2_hbm, wbuf2, sems, 1, g2_ref, b2_ref, h2_ref,
                  relu=True, affine=True,
                  prime_next=lambda: tile0_copy(w3_hbm, wbuf3, 2).start())
    # Layer 3: Linear -> BN(affine=False)
    _stream_layer(h2_ref, w3_hbm, wbuf3, sems, 2, None, None, o_ref,
                  relu=False, affine=False, prime_next=None)


def _pick_tile(dim):
    # Largest 128-multiple tile that gives >= 2 tiles (so weight DMA overlaps
    # compute); otherwise largest 128-multiple divisor; otherwise full width.
    for t in (512, 256, 128):
        if dim % t == 0 and dim // t >= 2:
            return t
    for t in (512, 256, 128):
        if dim % t == 0:
            return t
    return dim


def _tile_weight(w, tn):
    """(K, M) float -> (M//tn, K, tn) bf16, contiguous per output-column tile."""
    K, M = w.shape
    n = M // tn
    return w.astype(jnp.bfloat16).reshape(K, n, tn).transpose(1, 0, 2)


def prepare_params(w1, g1, b1, w2, g2, b2, w3):
    """One-time weight preparation (do NOT redo per forward call):
    cast weights to bf16 and pre-tile into (n_tiles, K, tn) contiguous layout
    so the kernel's weight DMAs are full-bandwidth contiguous copies."""
    tn_h = _pick_tile(w1.shape[1])
    tn_o = _pick_tile(w3.shape[1])
    return dict(
        w1=_tile_weight(w1, tn_h),
        w2=_tile_weight(w2, tn_h),
        w3=_tile_weight(w3, tn_o),
        g1=g1.astype(jnp.float32), b1=b1.astype(jnp.float32),
        g2=g2.astype(jnp.float32), b2=b2.astype(jnp.float32),
    )


def projector_mlp(x, prepped):
    """Forward pass.

    x: (N, d_in) f32  -> returns (N, d_out)   [one module forward call], or
       (V, N, d_in)   -> returns (V, N, d_out) [V independent forward calls,
       e.g. the two SimSiam views, mapped to a "parallel" grid axis].
    prepped: output of prepare_params().
    """
    squeeze = (x.ndim == 2)
    if squeeze:
        x = x[None]
    V, N, d_in = x.shape

    w1, w2, w3 = prepped["w1"], prepped["w2"], prepped["w3"]
    g1, b1, g2, b2 = prepped["g1"], prepped["b1"], prepped["g2"], prepped["b2"]
    n1, _, tn_h = w1.shape
    n3, _, tn_o = w3.shape
    d_hid = n1 * tn_h
    d_out = n3 * tn_o

    # bf16 MXU operands; all BN math stays f32 inside the kernel.
    xb = x.astype(jnp.bfloat16)

    # VMEM sizing: pipeline-buffered x/out blocks + scratch, capped to the
    # physical VMEM of this TPU generation (minus headroom).
    bf16, f32 = 2, 4
    need = (2 * N * d_in * bf16                    # x block (double-buffered)
            + 2 * N * d_out * f32                  # out block
            + 2 * 4 * 8 * d_hid * f32              # gammas/betas (sublane pad)
            + 2 * N * d_hid * bf16                 # h1, h2 scratch
            + 2 * (d_in * tn_h + d_hid * tn_h + d_hid * tn_o) * bf16)  # wbufs
    try:
        phys = pltpu.get_tpu_info().vmem_capacity_bytes
    except Exception:
        phys = 64 * 1024 * 1024                    # conservative (v7x per-TC)
    cap = phys - 8 * 1024 * 1024                   # compiler scratch headroom
    vmem_limit = int(min(max(need + (4 << 20), 32 << 20), cap))

    hbm = pl.BlockSpec(memory_space=pl.ANY)        # pre-tiled weights: manual DMA

    out = pl.pallas_call(
        projector_mlp_kernel,
        out_shape=jax.ShapeDtypeStruct((V, N, d_out), jnp.float32),
        grid=(V,),                                  # one BN batch (view) / step
        in_specs=[
            pl.BlockSpec((None, N, d_in), lambda v: (v, 0, 0)),
            pl.BlockSpec((1, d_hid), lambda v: (0, 0)),
            pl.BlockSpec((1, d_hid), lambda v: (0, 0)),
            pl.BlockSpec((1, d_hid), lambda v: (0, 0)),
            pl.BlockSpec((1, d_hid), lambda v: (0, 0)),
            hbm, hbm, hbm,
        ],
        out_specs=pl.BlockSpec((None, N, d_out), lambda v: (v, 0, 0)),
        scratch_shapes=[
            pltpu.VMEM((N, d_hid), jnp.bfloat16),        # h1 (bf16 MXU input)
            pltpu.VMEM((N, d_hid), jnp.bfloat16),        # h2
            pltpu.VMEM((2, d_in, tn_h), jnp.bfloat16),   # w1 tile double-buffer
            pltpu.VMEM((2, d_hid, tn_h), jnp.bfloat16),  # w2 tile double-buffer
            pltpu.VMEM((2, d_hid, tn_o), jnp.bfloat16),  # w3 tile double-buffer
            pltpu.SemaphoreType.DMA((3, 2)),
        ],
        compiler_params=pltpu.CompilerParams(
            dimension_semantics=("parallel",),           # views -> 2 TCs on v7x
            vmem_limit_bytes=vmem_limit),
    )(xb, g1, b1, g2, b2, w1, w2, w3)

    return out[0] if squeeze else out


def init_params(key, input_dim, hidden_dim, output_dim):
    k1, k2, k3 = jax.random.split(key, 3)

    def linear_w(k, fan_in, fan_out):
        # Deterministic stand-in for PyTorch's kaiming-uniform init,
        # stored as (in, out) so the kernel computes x @ W.
        bound = 1.0 / jnp.sqrt(fan_in)
        return jax.random.uniform(k, (fan_in, fan_out), jnp.float32,
                                  minval=-bound, maxval=bound)

    w1 = linear_w(k1, input_dim, hidden_dim)
    w2 = linear_w(k2, hidden_dim, hidden_dim)
    w3 = linear_w(k3, hidden_dim, output_dim)
    # BatchNorm1d defaults: weight=1, bias=0.
    g1 = jnp.ones((1, hidden_dim), jnp.float32)
    b1 = jnp.zeros((1, hidden_dim), jnp.float32)
    g2 = jnp.ones((1, hidden_dim), jnp.float32)
    b2 = jnp.zeros((1, hidden_dim), jnp.float32)
    return w1, g1, b1, w2, g2, b2, w3


def reference_forward(x, w1, g1, b1, w2, g2, b2, w3,
                      matmul_dtype=jnp.float32):
    """Pure-JAX reference. matmul_dtype=bfloat16 emulates the kernel's
    quantization points exactly (BN math stays f32)."""
    def mm(a, w):
        return jnp.dot(a.astype(matmul_dtype), w.astype(matmul_dtype),
                       preferred_element_type=jnp.float32)

    def bn(h, g=None, b=None):
        m = h.mean(0, keepdims=True)
        v = ((h - m) ** 2).mean(0, keepdims=True)
        hn = (h - m) * lax.rsqrt(v + EPS)
        return hn * g + b if g is not None else hn

    h = jnp.maximum(bn(mm(x, w1), g1, b1), 0.0)
    h = jnp.maximum(bn(mm(h, w2), g2, b2), 0.0)
    return bn(mm(h, w3))


if __name__ == "__main__":
    # Small shapes consistent with the module (input = hidden = output dim),
    # chosen so each layer streams 2 weight tiles (exercises the DMA pipeline
    # and the cross-layer prefetch).  For real SimSiam sizes use per-TC
    # batch >= 256 to fill the MXU rows.
    N, input_dim, hidden_dim, output_dim = 64, 256, 256, 256

    key = jax.random.PRNGKey(0)
    kx, kx2, kp = jax.random.split(key, 3)
    x = jax.random.normal(kx, (N, input_dim), jnp.float32)
    raw = init_params(kp, input_dim, hidden_dim, output_dim)
    prepped = prepare_params(*raw)   # one-time weight cast + pre-tiling

    # Single forward call (module semantics: BN over the batch of x).
    out = jax.block_until_ready(projector_mlp(x, prepped))
    assert out.shape == (N, output_dim)

    # Structural check: reference emulating the same bf16 MXU quantization.
    ref_bf16 = reference_forward(x, *raw, matmul_dtype=jnp.bfloat16)
    err_bf16 = float(jnp.max(jnp.abs(out - ref_bf16)))
    assert err_bf16 < 2e-3, f"mismatch vs bf16-emulated reference: {err_bf16}"

    # Semantic check vs pure-f32 PyTorch semantics (bf16 MXU -> small deltas;
    # BN keeps outputs O(1), so a loose absolute tolerance suffices).
    ref_f32 = reference_forward(x, *raw, matmul_dtype=jnp.float32)
    err_f32 = float(jnp.max(jnp.abs(out - ref_f32)))
    assert err_f32 < 1.5e-1, f"mismatch vs f32 reference: {err_f32}"

    # Two SimSiam views stacked on the leading "parallel" grid axis
    # (== two independent forward calls; both TensorCores on v7x).
    x2 = jax.random.normal(kx2, (N, input_dim), jnp.float32)
    out2 = jax.block_until_ready(projector_mlp(jnp.stack([x, x2]), prepped))
    assert out2.shape == (2, N, output_dim)
    ref2 = reference_forward(x2, *raw, matmul_dtype=jnp.bfloat16)
    err_v0 = float(jnp.max(jnp.abs(out2[0] - ref_bf16)))
    err_v1 = float(jnp.max(jnp.abs(out2[1] - ref2)))
    assert err_v0 < 2e-3 and err_v1 < 2e-3, f"view mismatch: {err_v0}, {err_v1}"

    print("KERNEL_OK")
</pallas_src>

<mosaic_0001>
module attributes {stable_mosaic.version = 11 : i64} {
  func.func @projector_mlp_kernel(%arg0: i32, %arg1: memref<1x64x256xbf16, #tpu.memory_space<vmem>>, %arg2: memref<1x256xf32, #tpu.memory_space<vmem>>, %arg3: memref<1x256xf32, #tpu.memory_space<vmem>>, %arg4: memref<1x256xf32, #tpu.memory_space<vmem>>, %arg5: memref<1x256xf32, #tpu.memory_space<vmem>>, %arg6: memref<2x256x128xbf16, #tpu.memory_space<any>>, %arg7: memref<2x256x128xbf16, #tpu.memory_space<any>>, %arg8: memref<2x256x128xbf16, #tpu.memory_space<any>>, %arg9: memref<1x64x256xf32, #tpu.memory_space<vmem>>, %arg10: memref<64x256xbf16, #tpu.memory_space<vmem>>, %arg11: memref<64x256xbf16, #tpu.memory_space<vmem>>, %arg12: memref<2x256x128xbf16, #tpu.memory_space<vmem>>, %arg13: memref<2x256x128xbf16, #tpu.memory_space<vmem>>, %arg14: memref<2x256x128xbf16, #tpu.memory_space<vmem>>, %arg15: memref<3x2x!tpu.dma_semaphore, #tpu.memory_space<semaphore_mem>>) attributes {dimension_semantics = [#tpu.dimension_semantics<parallel>], iteration_bounds = array<i64: 1>, scalar_prefetch = 0 : i64, scratch_operands = 6 : i64, tpu.core_type = #tpu.core_type<tc>, window_params = [{transform_indices = @transform_0, window_bounds = array<i64: 1, 64, 256>}, {pipeline_mode = #tpu.pipeline_mode<synchronous>, transform_indices = @transform_1, window_bounds = array<i64: 1, 256>}, {pipeline_mode = #tpu.pipeline_mode<synchronous>, transform_indices = @transform_2, window_bounds = array<i64: 1, 256>}, {pipeline_mode = #tpu.pipeline_mode<synchronous>, transform_indices = @transform_3, window_bounds = array<i64: 1, 256>}, {pipeline_mode = #tpu.pipeline_mode<synchronous>, transform_indices = @transform_4, window_bounds = array<i64: 1, 256>}, {}, {}, {}, {transform_indices = @transform_8, window_bounds = array<i64: 1, 64, 256>}]} {
    %c0_i32 = arith.constant 0 : i32
    %c0_i32_0 = arith.constant 0 : i32
    %c0_i32_1 = arith.constant 0 : i32
    %c0_i32_2 = arith.constant 0 : i32
    %c0_i32_3 = arith.constant 0 : i32
    %c0_i32_4 = arith.constant 0 : i32
    %0 = tpu.memref_slice %arg6[%c0_i32, %c0_i32_3, %c0_i32_4] : memref<2x256x128xbf16, #tpu.memory_space<any>> -> memref<1x256x128xbf16, #tpu.memory_space<any>>
    %1 = tpu.memref_squeeze %0 : memref<1x256x128xbf16, #tpu.memory_space<any>> -> memref<256x128xbf16, #tpu.memory_space<any>>
    %c0_i32_5 = arith.constant 0 : i32
    %c0_i32_6 = arith.constant 0 : i32
    %2 = tpu.memref_slice %arg12[%c0_i32_0, %c0_i32_5, %c0_i32_6] : memref<2x256x128xbf16, #tpu.memory_space<vmem>> -> memref<1x256x128xbf16, #tpu.memory_space<vmem>>
    %3 = tpu.memref_squeeze %2 : memref<1x256x128xbf16, #tpu.memory_space<vmem>> -> memref<256x128xbf16, #tpu.memory_space<vmem>>
    %4 = tpu.memref_slice %arg15[%c0_i32_1, %c0_i32_2] : memref<3x2x!tpu.dma_semaphore, #tpu.memory_space<semaphore_mem>> -> memref<1x1x!tpu.dma_semaphore, #tpu.memory_space<semaphore_mem>>
    %5 = tpu.memref_squeeze %4 : memref<1x1x!tpu.dma_semaphore, #tpu.memory_space<semaphore_mem>> -> memref<!tpu.dma_semaphore, #tpu.memory_space<semaphore_mem>>
    tpu.enqueue_dma source(%1 : memref<256x128xbf16, #tpu.memory_space<any>>) target(%3 : memref<256x128xbf16, #tpu.memory_space<vmem>>) target_semaphore(%5 : memref<!tpu.dma_semaphore, #tpu.memory_space<semaphore_mem>>)
    %c0_i32_7 = arith.constant 0 : i32
    %c0_i32_8 = arith.constant 0 : i32
    %c0_i32_9 = arith.constant 0 : i32
    %c0_i32_10 = arith.constant 0 : i32
    %c0_i32_11 = arith.constant 0 : i32
    %c0_i32_12 = arith.constant 0 : i32
    %6 = tpu.memref_slice %arg6[%c0_i32_7, %c0_i32_11, %c0_i32_12] : memref<2x256x128xbf16, #tpu.memory_space<any>> -> memref<1x256x128xbf16, #tpu.memory_space<any>>
    %7 = tpu.memref_squeeze %6 : memref<1x256x128xbf16, #tpu.memory_space<any>> -> memref<256x128xbf16, #tpu.memory_space<any>>
    %c0_i32_13 = arith.constant 0 : i32
    %c0_i32_14 = arith.constant 0 : i32
    %8 = tpu.memref_slice %arg12[%c0_i32_8, %c0_i32_13, %c0_i32_14] : memref<2x256x128xbf16, #tpu.memory_space<vmem>> -> memref<1x256x128xbf16, #tpu.memory_space<vmem>>
    %9 = tpu.memref_squeeze %8 : memref<1x256x128xbf16, #tpu.memory_space<vmem>> -> memref<256x128xbf16, #tpu.memory_space<vmem>>
    %10 = tpu.memref_slice %arg15[%c0_i32_9, %c0_i32_10] : memref<3x2x!tpu.dma_semaphore, #tpu.memory_space<semaphore_mem>> -> memref<1x1x!tpu.dma_semaphore, #tpu.memory_space<semaphore_mem>>
    %11 = tpu.memref_squeeze %10 : memref<1x1x!tpu.dma_semaphore, #tpu.memory_space<semaphore_mem>> -> memref<!tpu.dma_semaphore, #tpu.memory_space<semaphore_mem>>
    tpu.wait_dma2 semaphore(%11 : memref<!tpu.dma_semaphore, #tpu.memory_space<semaphore_mem>>) src(%7 : memref<256x128xbf16, #tpu.memory_space<any>>) dst(%9 : memref<256x128xbf16, #tpu.memory_space<vmem>>)
    %c1_i32 = arith.constant 1 : i32
    %c1_i32_15 = arith.constant 1 : i32
    %c0_i32_16 = arith.constant 0 : i32
    %c1_i32_17 = arith.constant 1 : i32
    %c0_i32_18 = arith.constant 0 : i32
    %c0_i32_19 = arith.constant 0 : i32
    %12 = tpu.memref_slice %arg6[%c1_i32, %c0_i32_18, %c0_i32_19] : memref<2x256x128xbf16, #tpu.memory_space<any>> -> memref<1x256x128xbf16, #tpu.memory_space<any>>
    %13 = tpu.memref_squeeze %12 : memref<1x256x128xbf16, #tpu.memory_space<any>> -> memref<256x128xbf16, #tpu.memory_space<any>>
    %c0_i32_20 = arith.constant 0 : i32
    %c0_i32_21 = arith.constant 0 : i32
    %14 = tpu.memref_slice %arg12[%c1_i32_15, %c0_i32_20, %c0_i32_21] : memref<2x256x128xbf16, #tpu.memory_space<vmem>> -> memref<1x256x128xbf16, #tpu.memory_space<vmem>>
    %15 = tpu.memref_squeeze %14 : memref<1x256x128xbf16, #tpu.memory_space<vmem>> -> memref<256x128xbf16, #tpu.memory_space<vmem>>
    %16 = tpu.memref_slice %arg15[%c0_i32_16, %c1_i32_17] : memref<3x2x!tpu.dma_semaphore, #tpu.memory_space<semaphore_mem>> -> memref<1x1x!tpu.dma_semaphore, #tpu.memory_space<semaphore_mem>>
    %17 = tpu.memref_squeeze %16 : memref<1x1x!tpu.dma_semaphore, #tpu.memory_space<semaphore_mem>> -> memref<!tpu.dma_semaphore, #tpu.memory_space<semaphore_mem>>
    tpu.enqueue_dma source(%13 : memref<256x128xbf16, #tpu.memory_space<any>>) target(%15 : memref<256x128xbf16, #tpu.memory_space<vmem>>) target_semaphore(%17 : memref<!tpu.dma_semaphore, #tpu.memory_space<semaphore_mem>>)
    %c0 = arith.constant 0 : index
    %c0_22 = arith.constant 0 : index
    %c0_23 = arith.constant 0 : index
    %18 = vector.load %arg1[%c0, %c0_22, %c0_23] : memref<1x64x256xbf16, #tpu.memory_space<vmem>>, vector<1x64x256xbf16>
    %19 = vector.shape_cast %18 : vector<1x64x256xbf16> to vector<64x256xbf16>
    %c0_24 = arith.constant 0 : index
    %c0_25 = arith.constant 0 : index
    %c0_26 = arith.constant 0 : index
    %20 = vector.load %arg12[%c0_24, %c0_25, %c0_26] : memref<2x256x128xbf16, #tpu.memory_space<vmem>>, vector<1x256x128xbf16>
    %21 = vector.shape_cast %20 : vector<1x256x128xbf16> to vector<256x128xbf16>
    %cst = arith.constant dense<0.000000e+00> : vector<64x128xf32>
    %22 = tpu.matmul %19, %21, %cst {dimension_numbers = #tpu.dot_dimension_numbers<[1], [0], [0], [1], [0, 0, 1, 1], [], []>} : vector<64x256xbf16>, vector<256x128xbf16>, vector<64x128xf32> -> vector<64x128xf32>
    %cst_27 = arith.constant dense<0.000000e+00> : vector<128xf32>
    %23 = vector.multi_reduction <add>, %22, %cst_27 [0] : vector<64x128xf32> to vector<128xf32>
    %24 = vector.shape_cast %23 : vector<128xf32> to vector<1x128xf32>
    %cst_28 = arith.constant 6.400000e+01 : f32
    %25 = vector.broadcast %cst_28 : f32 to vector<1x128xf32>
    %26 = arith.divf %24, %25 : vector<1x128xf32>
    %27 = vector.broadcast %26 : vector<1x128xf32> to vector<64x128xf32>
    %28 = arith.subf %22, %27 : vector<64x128xf32>
    %29 = arith.mulf %28, %28 : vector<64x128xf32>
    %cst_29 = arith.constant dense<0.000000e+00> : vector<128xf32>
    %30 = vector.multi_reduction <add>, %29, %cst_29 [0] : vector<64x128xf32> to vector<128xf32>
    %31 = vector.shape_cast %30 : vector<128xf32> to vector<1x128xf32>
    %cst_30 = arith.constant 6.400000e+01 : f32
    %32 = vector.broadcast %cst_30 : f32 to vector<1x128xf32>
    %33 = arith.divf %31, %32 : vector<1x128xf32>
    %cst_31 = arith.constant 9.99999974E-6 : f32
    %34 = vector.broadcast %cst_31 : f32 to vector<1x128xf32>
    %35 = arith.addf %33, %34 : vector<1x128xf32>
    %36 = math.rsqrt %35 : vector<1x128xf32>
    %c0_32 = arith.constant 0 : index
    %c0_33 = arith.constant 0 : index
    %37 = vector.load %arg2[%c0_32, %c0_33] : memref<1x256xf32, #tpu.memory_space<vmem>>, vector<1x128xf32>
    %38 = arith.mulf %37, %36 : vector<1x128xf32>
    %39 = vector.broadcast %38 : vector<1x128xf32> to vector<64x128xf32>
    %40 = arith.mulf %28, %39 : vector<64x128xf32>
    %c0_34 = arith.constant 0 : index
    %c0_35 = arith.constant 0 : index
    %41 = vector.load %arg3[%c0_34, %c0_35] : memref<1x256xf32, #tpu.memory_space<vmem>>, vector<1x128xf32>
    %42 = vector.broadcast %41 : vector<1x128xf32> to vector<64x128xf32>
    %43 = arith.addf %40, %42 : vector<64x128xf32>
    %cst_36 = arith.constant 0.000000e+00 : f32
    %44 = vector.broadcast %cst_36 : f32 to vector<64x128xf32>
    %45 = arith.maximumf %43, %44 : vector<64x128xf32>
    %46 = arith.truncf %45 : vector<64x128xf32> to vector<64x128xbf16>
    %c0_37 = arith.constant 0 : index
    %c0_38 = arith.constant 0 : index
    %47 = vector.load %arg10[%c0_37, %c0_38] : memref<64x256xbf16, #tpu.memory_space<vmem>>, vector<64x128xbf16>
    tpu.vector_store %arg10[%c0_37, %c0_38], %46 {strides = array<i32>} : memref<64x256xbf16, #tpu.memory_space<vmem>>, vector<64x128xbf16>,
    %c1_i32_39 = arith.constant 1 : i32
    %c1_i32_40 = arith.constant 1 : i32
    %c0_i32_41 = arith.constant 0 : i32
    %c1_i32_42 = arith.constant 1 : i32
    %c0_i32_43 = arith.constant 0 : i32
    %c0_i32_44 = arith.constant 0 : i32
    %48 = tpu.memref_slice %arg6[%c1_i32_39, %c0_i32_43, %c0_i32_44] : memref<2x256x128xbf16, #tpu.memory_space<any>> -> memref<1x256x128xbf16, #tpu.memory_space<any>>
    %49 = tpu.memref_squeeze %48 : memref<1x256x128xbf16, #tpu.memory_space<any>> -> memref<256x128xbf16, #tpu.memory_space<any>>
    %c0_i32_45 = arith.constant 0 : i32
    %c0_i32_46 = arith.constant 0 : i32
    %50 = tpu.memref_slice %arg12[%c1_i32_40, %c0_i32_45, %c0_i32_46] : memref<2x256x128xbf16, #tpu.memory_space<vmem>> -> memref<1x256x128xbf16, #tpu.memory_space<vmem>>
    %51 = tpu.memref_squeeze %50 : memref<1x256x128xbf16, #tpu.memory_space<vmem>> -> memref<256x128xbf16, #tpu.memory_space<vmem>>
    %52 = tpu.memref_slice %arg15[%c0_i32_41, %c1_i32_42] : memref<3x2x!tpu.dma_semaphore, #tpu.memory_space<semaphore_mem>> -> memref<1x1x!tpu.dma_semaphore, #tpu.memory_space<semaphore_mem>>
    %53 = tpu.memref_squeeze %52 : memref<1x1x!tpu.dma_semaphore, #tpu.memory_space<semaphore_mem>> -> memref<!tpu.dma_semaphore, #tpu.memory_space<semaphore_mem>>
    tpu.wait_dma2 semaphore(%53 : memref<!tpu.dma_semaphore, #tpu.memory_space<semaphore_mem>>) src(%49 : memref<256x128xbf16, #tpu.memory_space<any>>) dst(%51 : memref<256x128xbf16, #tpu.memory_space<vmem>>)
    %c0_i32_47 = arith.constant 0 : i32
    %c0_i32_48 = arith.constant 0 : i32
    %c1_i32_49 = arith.constant 1 : i32
    %c0_i32_50 = arith.constant 0 : i32
    %c0_i32_51 = arith.constant 0 : i32
    %c0_i32_52 = arith.constant 0 : i32
    %54 = tpu.memref_slice %arg7[%c0_i32_47, %c0_i32_51, %c0_i32_52] : memref<2x256x128xbf16, #tpu.memory_space<any>> -> memref<1x256x128xbf16, #tpu.memory_space<any>>
    %55 = tpu.memref_squeeze %54 : memref<1x256x128xbf16, #tpu.memory_space<any>> -> memref<256x128xbf16, #tpu.memory_space<any>>
    %c0_i32_53 = arith.constant 0 : i32
    %c0_i32_54 = arith.constant 0 : i32
    %56 = tpu.memref_slice %arg13[%c0_i32_48, %c0_i32_53, %c0_i32_54] : memref<2x256x128xbf16, #tpu.memory_space<vmem>> -> memref<1x256x128xbf16, #tpu.memory_space<vmem>>
    %57 = tpu.memref_squeeze %56 : memref<1x256x128xbf16, #tpu.memory_space<vmem>> -> memref<256x128xbf16, #tpu.memory_space<vmem>>
    %58 = tpu.memref_slice %arg15[%c1_i32_49, %c0_i32_50] : memref<3x2x!tpu.dma_semaphore, #tpu.memory_space<semaphore_mem>> -> memref<1x1x!tpu.dma_semaphore, #tpu.memory_space<semaphore_mem>>
    %59 = tpu.memref_squeeze %58 : memref<1x1x!tpu.dma_semaphore, #tpu.memory_space<semaphore_mem>> -> memref<!tpu.dma_semaphore, #tpu.memory_space<semaphore_mem>>
    tpu.enqueue_dma source(%55 : memref<256x128xbf16, #tpu.memory_space<any>>) target(%57 : memref<256x128xbf16, #tpu.memory_space<vmem>>) target_semaphore(%59 : memref<!tpu.dma_semaphore, #tpu.memory_space<semaphore_mem>>)
    %c0_55 = arith.constant 0 : index
    %c0_56 = arith.constant 0 : index
    %c0_57 = arith.constant 0 : index
    %60 = vector.load %arg1[%c0_55, %c0_56, %c0_57] : memref<1x64x256xbf16, #tpu.memory_space<vmem>>, vector<1x64x256xbf16>
    %61 = vector.shape_cast %60 : vector<1x64x256xbf16> to vector<64x256xbf16>
    %c1 = arith.constant 1 : index
    %c0_58 = arith.constant 0 : index
    %c0_59 = arith.constant 0 : index
    %62 = vector.load %arg12[%c1, %c0_58, %c0_59] : memref<2x256x128xbf16, #tpu.memory_space<vmem>>, vector<1x256x128xbf16>
    %63 = vector.shape_cast %62 : vector<1x256x128xbf16> to vector<256x128xbf16>
    %cst_60 = arith.constant dense<0.000000e+00> : vector<64x128xf32>
    %64 = tpu.matmul %61, %63, %cst_60 {dimension_numbers = #tpu.dot_dimension_numbers<[1], [0], [0], [1], [0, 0, 1, 1], [], []>} : vector<64x256xbf16>, vector<256x128xbf16>, vector<64x128xf32> -> vector<64x128xf32>
    %cst_61 = arith.constant dense<0.000000e+00> : vector<128xf32>
    %65 = vector.multi_reduction <add>, %64, %cst_61 [0] : vector<64x128xf32> to vector<128xf32>
    %66 = vector.shape_cast %65 : vector<128xf32> to vector<1x128xf32>
    %cst_62 = arith.constant 6.400000e+01 : f32
    %67 = vector.broadcast %cst_62 : f32 to vector<1x128xf32>
    %68 = arith.divf %66, %67 : vector<1x128xf32>
    %69 = vector.broadcast %68 : vector<1x128xf32> to vector<64x128xf32>
    %70 = arith.subf %64, %69 : vector<64x128xf32>
    %71 = arith.mulf %70, %70 : vector<64x128xf32>
    %cst_63 = arith.constant dense<0.000000e+00> : vector<128xf32>
    %72 = vector.multi_reduction <add>, %71, %cst_63 [0] : vector<64x128xf32> to vector<128xf32>
    %73 = vector.shape_cast %72 : vector<128xf32> to vector<1x128xf32>
    %cst_64 = arith.constant 6.400000e+01 : f32
    %74 = vector.broadcast %cst_64 : f32 to vector<1x128xf32>
    %75 = arith.divf %73, %74 : vector<1x128xf32>
    %cst_65 = arith.constant 9.99999974E-6 : f32
    %76 = vector.broadcast %cst_65 : f32 to vector<1x128xf32>
    %77 = arith.addf %75, %76 : vector<1x128xf32>
    %78 = math.rsqrt %77 : vector<1x128xf32>
    %c0_66 = arith.constant 0 : index
    %c128 = arith.constant 128 : index
    %79 = vector.load %arg2[%c0_66, %c128] : memref<1x256xf32, #tpu.memory_space<vmem>>, vector<1x128xf32>
    %80 = arith.mulf %79, %78 : vector<1x128xf32>
    %81 = vector.broadcast %80 : vector<1x128xf32> to vector<64x128xf32>
    %82 = arith.mulf %70, %81 : vector<64x128xf32>
    %c0_67 = arith.constant 0 : index
    %c128_68 = arith.constant 128 : index
    %83 = vector.load %arg3[%c0_67, %c128_68] : memref<1x256xf32, #tpu.memory_space<vmem>>, vector<1x128xf32>
    %84 = vector.broadcast %83 : vector<1x128xf32> to vector<64x128xf32>
    %85 = arith.addf %82, %84 : vector<64x128xf32>
    %cst_69 = arith.constant 0.000000e+00 : f32
    %86 = vector.broadcast %cst_69 : f32 to vector<64x128xf32>
    %87 = arith.maximumf %85, %86 : vector<64x128xf32>
    %88 = arith.truncf %87 : vector<64x128xf32> to vector<64x128xbf16>
    %c0_70 = arith.constant 0 : index
    %c128_71 = arith.constant 128 : index
    %89 = vector.load %arg10[%c0_70, %c128_71] : memref<64x256xbf16, #tpu.memory_space<vmem>>, vector<64x128xbf16>
    tpu.vector_store %arg10[%c0_70, %c128_71], %88 {strides = array<i32>} : memref<64x256xbf16, #tpu.memory_space<vmem>>, vector<64x128xbf16>,
    %c0_i32_72 = arith.constant 0 : i32
    %c0_i32_73 = arith.constant 0 : i32
    %c1_i32_74 = arith.constant 1 : i32
    %c0_i32_75 = arith.constant 0 : i32
    %c0_i32_76 = arith.constant 0 : i32
    %c0_i32_77 = arith.constant 0 : i32
    %90 = tpu.memref_slice %arg7[%c0_i32_72, %c0_i32_76, %c0_i32_77] : memref<2x256x128xbf16, #tpu.memory_space<any>> -> memref<1x256x128xbf16, #tpu.memory_space<any>>
    %91 = tpu.memref_squeeze %90 : memref<1x256x128xbf16, #tpu.memory_space<any>> -> memref<256x128xbf16, #tpu.memory_space<any>>
    %c0_i32_78 = arith.constant 0 : i32
    %c0_i32_79 = arith.constant 0 : i32
    %92 = tpu.memref_slice %arg13[%c0_i32_73, %c0_i32_78, %c0_i32_79] : memref<2x256x128xbf16, #tpu.memory_space<vmem>> -> memref<1x256x128xbf16, #tpu.memory_space<vmem>>
    %93 = tpu.memref_squeeze %92 : memref<1x256x128xbf16, #tpu.memory_space<vmem>> -> memref<256x128xbf16, #tpu.memory_space<vmem>>
    %94 = tpu.memref_slice %arg15[%c1_i32_74, %c0_i32_75] : memref<3x2x!tpu.dma_semaphore, #tpu.memory_space<semaphore_mem>> -> memref<1x1x!tpu.dma_semaphore, #tpu.memory_space<semaphore_mem>>
    %95 = tpu.memref_squeeze %94 : memref<1x1x!tpu.dma_semaphore, #tpu.memory_space<semaphore_mem>> -> memref<!tpu.dma_semaphore, #tpu.memory_space<semaphore_mem>>
    tpu.wait_dma2 semaphore(%95 : memref<!tpu.dma_semaphore, #tpu.memory_space<semaphore_mem>>) src(%91 : memref<256x128xbf16, #tpu.memory_space<any>>) dst(%93 : memref<256x128xbf16, #tpu.memory_space<vmem>>)
    %c1_i32_80 = arith.constant 1 : i32
    %c1_i32_81 = arith.constant 1 : i32
    %c1_i32_82 = arith.constant 1 : i32
    %c1_i32_83 = arith.constant 1 : i32
    %c0_i32_84 = arith.constant 0 : i32
    %c0_i32_85 = arith.constant 0 : i32
    %96 = tpu.memref_slice %arg7[%c1_i32_80, %c0_i32_84, %c0_i32_85] : memref<2x256x128xbf16, #tpu.memory_space<any>> -> memref<1x256x128xbf16, #tpu.memory_space<any>>
    %97 = tpu.memref_squeeze %96 : memref<1x256x128xbf16, #tpu.memory_space<any>> -> memref<256x128xbf16, #tpu.memory_space<any>>
    %c0_i32_86 = arith.constant 0 : i32
    %c0_i32_87 = arith.constant 0 : i32
    %98 = tpu.memref_slice %arg13[%c1_i32_81, %c0_i32_86, %c0_i32_87] : memref<2x256x128xbf16, #tpu.memory_space<vmem>> -> memref<1x256x128xbf16, #tpu.memory_space<vmem>>
    %99 = tpu.memref_squeeze %98 : memref<1x256x128xbf16, #tpu.memory_space<vmem>> -> memref<256x128xbf16, #tpu.memory_space<vmem>>
    %100 = tpu.memref_slice %arg15[%c1_i32_82, %c1_i32_83] : memref<3x2x!tpu.dma_semaphore, #tpu.memory_space<semaphore_mem>> -> memref<1x1x!tpu.dma_semaphore, #tpu.memory_space<semaphore_mem>>
    %101 = tpu.memref_squeeze %100 : memref<1x1x!tpu.dma_semaphore, #tpu.memory_space<semaphore_mem>> -> memref<!tpu.dma_semaphore, #tpu.memory_space<semaphore_mem>>
    tpu.enqueue_dma source(%97 : memref<256x128xbf16, #tpu.memory_space<any>>) target(%99 : memref<256x128xbf16, #tpu.memory_space<vmem>>) target_semaphore(%101 : memref<!tpu.dma_semaphore, #tpu.memory_space<semaphore_mem>>)
    %c0_88 = arith.constant 0 : index
    %c0_89 = arith.constant 0 : index
    %102 = vector.load %arg10[%c0_88, %c0_89] : memref<64x256xbf16, #tpu.memory_space<vmem>>, vector<64x256xbf16>
    %c0_90 = arith.constant 0 : index
    %c0_91 = arith.constant 0 : index
    %c0_92 = arith.constant 0 : index
    %103 = vector.load %arg13[%c0_90, %c0_91, %c0_92] : memref<2x256x128xbf16, #tpu.memory_space<vmem>>, vector<1x256x128xbf16>
    %104 = vector.shape_cast %103 : vector<1x256x128xbf16> to vector<256x128xbf16>
    %cst_93 = arith.constant dense<0.000000e+00> : vector<64x128xf32>
    %105 = tpu.matmul %102, %104, %cst_93 {dimension_numbers = #tpu.dot_dimension_numbers<[1], [0], [0], [1], [0, 0, 1, 1], [], []>} : vector<64x256xbf16>, vector<256x128xbf16>, vector<64x128xf32> -> vector<64x128xf32>
    %cst_94 = arith.constant dense<0.000000e+00> : vector<128xf32>
    %106 = vector.multi_reduction <add>, %105, %cst_94 [0] : vector<64x128xf32> to vector<128xf32>
    %107 = vector.shape_cast %106 : vector<128xf32> to vector<1x128xf32>
    %cst_95 = arith.constant 6.400000e+01 : f32
    %108 = vector.broadcast %cst_95 : f32 to vector<1x128xf32>
    %109 = arith.divf %107, %108 : vector<1x128xf32>
    %110 = vector.broadcast %109 : vector<1x128xf32> to vector<64x128xf32>
    %111 = arith.subf %105, %110 : vector<64x128xf32>
    %112 = arith.mulf %111, %111 : vector<64x128xf32>
    %cst_96 = arith.constant dense<0.000000e+00> : vector<128xf32>
    %113 = vector.multi_reduction <add>, %112, %cst_96 [0] : vector<64x128xf32> to vector<128xf32>
    %114 = vector.shape_cast %113 : vector<128xf32> to vector<1x128xf32>
    %cst_97 = arith.constant 6.400000e+01 : f32
    %115 = vector.broadcast %cst_97 : f32 to vector<1x128xf32>
    %116 = arith.divf %114, %115 : vector<1x128xf32>
    %cst_98 = arith.constant 9.99999974E-6 : f32
    %117 = vector.broadcast %cst_98 : f32 to vector<1x128xf32>
    %118 = arith.addf %116, %117 : vector<1x128xf32>
    %119 = math.rsqrt %118 : vector<1x128xf32>
    %c0_99 = arith.constant 0 : index
    %c0_100 = arith.constant 0 : index
    %120 = vector.load %arg4[%c0_99, %c0_100] : memref<1x256xf32, #tpu.memory_space<vmem>>, vector<1x128xf32>
    %121 = arith.mulf %120, %119 : vector<1x128xf32>
    %122 = vector.broadcast %121 : vector<1x128xf32> to vector<64x128xf32>
    %123 = arith.mulf %111, %122 : vector<64x128xf32>
    %c0_101 = arith.constant 0 : index
    %c0_102 = arith.constant 0 : index
    %124 = vector.load %arg5[%c0_101, %c0_102] : memref<1x256xf32, #tpu.memory_space<vmem>>, vector<1x128xf32>
    %125 = vector.broadcast %124 : vector<1x128xf32> to vector<64x128xf32>
    %126 = arith.addf %123, %125 : vector<64x128xf32>
    %cst_103 = arith.constant 0.000000e+00 : f32
    %127 = vector.broadcast %cst_103 : f32 to vector<64x128xf32>
    %128 = arith.maximumf %126, %127 : vector<64x128xf32>
    %129 = arith.truncf %128 : vector<64x128xf32> to vector<64x128xbf16>
    %c0_104 = arith.constant 0 : index
    %c0_105 = arith.constant 0 : index
    %130 = vector.load %arg11[%c0_104, %c0_105] : memref<64x256xbf16, #tpu.memory_space<vmem>>, vector<64x128xbf16>
    tpu.vector_store %arg11[%c0_104, %c0_105], %129 {strides = array<i32>} : memref<64x256xbf16, #tpu.memory_space<vmem>>, vector<64x128xbf16>,
    %c1_i32_106 = arith.constant 1 : i32
    %c1_i32_107 = arith.constant 1 : i32
    %c1_i32_108 = arith.constant 1 : i32
    %c1_i32_109 = arith.constant 1 : i32
    %c0_i32_110 = arith.constant 0 : i32
    %c0_i32_111 = arith.constant 0 : i32
    %131 = tpu.memref_slice %arg7[%c1_i32_106, %c0_i32_110, %c0_i32_111] : memref<2x256x128xbf16, #tpu.memory_space<any>> -> memref<1x256x128xbf16, #tpu.memory_space<any>>
    %132 = tpu.memref_squeeze %131 : memref<1x256x128xbf16, #tpu.memory_space<any>> -> memref<256x128xbf16, #tpu.memory_space<any>>
    %c0_i32_112 = arith.constant 0 : i32
    %c0_i32_113 = arith.constant 0 : i32
    %133 = tpu.memref_slice %arg13[%c1_i32_107, %c0_i32_112, %c0_i32_113] : memref<2x256x128xbf16, #tpu.memory_space<vmem>> -> memref<1x256x128xbf16, #tpu.memory_space<vmem>>
    %134 = tpu.memref_squeeze %133 : memref<1x256x128xbf16, #tpu.memory_space<vmem>> -> memref<256x128xbf16, #tpu.memory_space<vmem>>
    %135 = tpu.memref_slice %arg15[%c1_i32_108, %c1_i32_109] : memref<3x2x!tpu.dma_semaphore, #tpu.memory_space<semaphore_mem>> -> memref<1x1x!tpu.dma_semaphore, #tpu.memory_space<semaphore_mem>>
    %136 = tpu.memref_squeeze %135 : memref<1x1x!tpu.dma_semaphore, #tpu.memory_space<semaphore_mem>> -> memref<!tpu.dma_semaphore, #tpu.memory_space<semaphore_mem>>
    tpu.wait_dma2 semaphore(%136 : memref<!tpu.dma_semaphore, #tpu.memory_space<semaphore_mem>>) src(%132 : memref<256x128xbf16, #tpu.memory_space<any>>) dst(%134 : memref<256x128xbf16, #tpu.memory_space<vmem>>)
    %c0_i32_114 = arith.constant 0 : i32
    %c0_i32_115 = arith.constant 0 : i32
    %c2_i32 = arith.constant 2 : i32
    %c0_i32_116 = arith.constant 0 : i32
    %c0_i32_117 = arith.constant 0 : i32
    %c0_i32_118 = arith.constant 0 : i32
    %137 = tpu.memref_slice %arg8[%c0_i32_114, %c0_i32_117, %c0_i32_118] : memref<2x256x128xbf16, #tpu.memory_space<any>> -> memref<1x256x128xbf16, #tpu.memory_space<any>>
    %138 = tpu.memref_squeeze %137 : memref<1x256x128xbf16, #tpu.memory_space<any>> -> memref<256x128xbf16, #tpu.memory_space<any>>
    %c0_i32_119 = arith.constant 0 : i32
    %c0_i32_120 = arith.constant 0 : i32
    %139 = tpu.memref_slice %arg14[%c0_i32_115, %c0_i32_119, %c0_i32_120] : memref<2x256x128xbf16, #tpu.memory_space<vmem>> -> memref<1x256x128xbf16, #tpu.memory_space<vmem>>
    %140 = tpu.memref_squeeze %139 : memref<1x256x128xbf16, #tpu.memory_space<vmem>> -> memref<256x128xbf16, #tpu.memory_space<vmem>>
    %141 = tpu.memref_slice %arg15[%c2_i32, %c0_i32_116] : memref<3x2x!tpu.dma_semaphore, #tpu.memory_space<semaphore_mem>> -> memref<1x1x!tpu.dma_semaphore, #tpu.memory_space<semaphore_mem>>
    %142 = tpu.memref_squeeze %141 : memref<1x1x!tpu.dma_semaphore, #tpu.memory_space<semaphore_mem>> -> memref<!tpu.dma_semaphore, #tpu.memory_space<semaphore_mem>>
    tpu.enqueue_dma source(%138 : memref<256x128xbf16, #tpu.memory_space<any>>) target(%140 : memref<256x128xbf16, #tpu.memory_space<vmem>>) target_semaphore(%142 : memref<!tpu.dma_semaphore, #tpu.memory_space<semaphore_mem>>)
    %c0_121 = arith.constant 0 : index
    %c0_122 = arith.constant 0 : index
    %143 = vector.load %arg10[%c0_121, %c0_122] : memref<64x256xbf16, #tpu.memory_space<vmem>>, vector<64x256xbf16>
    %c1_123 = arith.constant 1 : index
    %c0_124 = arith.constant 0 : index
    %c0_125 = arith.constant 0 : index
    %144 = vector.load %arg13[%c1_123, %c0_124, %c0_125] : memref<2x256x128xbf16, #tpu.memory_space<vmem>>, vector<1x256x128xbf16>
    %145 = vector.shape_cast %144 : vector<1x256x128xbf16> to vector<256x128xbf16>
    %cst_126 = arith.constant dense<0.000000e+00> : vector<64x128xf32>
    %146 = tpu.matmul %143, %145, %cst_126 {dimension_numbers = #tpu.dot_dimension_numbers<[1], [0], [0], [1], [0, 0, 1, 1], [], []>} : vector<64x256xbf16>, vector<256x128xbf16>, vector<64x128xf32> -> vector<64x128xf32>
    %cst_127 = arith.constant dense<0.000000e+00> : vector<128xf32>
    %147 = vector.multi_reduction <add>, %146, %cst_127 [0] : vector<64x128xf32> to vector<128xf32>
    %148 = vector.shape_cast %147 : vector<128xf32> to vector<1x128xf32>
    %cst_128 = arith.constant 6.400000e+01 : f32
    %149 = vector.broadcast %cst_128 : f32 to vector<1x128xf32>
    %150 = arith.divf %148, %149 : vector<1x128xf32>
    %151 = vector.broadcast %150 : vector<1x128xf32> to vector<64x128xf32>
    %152 = arith.subf %146, %151 : vector<64x128xf32>
    %153 = arith.mulf %152, %152 : vector<64x128xf32>
    %cst_129 = arith.constant dense<0.000000e+00> : vector<128xf32>
    %154 = vector.multi_reduction <add>, %153, %cst_129 [0] : vector<64x128xf32> to vector<128xf32>
    %155 = vector.shape_cast %154 : vector<128xf32> to vector<1x128xf32>
    %cst_130 = arith.constant 6.400000e+01 : f32
    %156 = vector.broadcast %cst_130 : f32 to vector<1x128xf32>
    %157 = arith.divf %155, %156 : vector<1x128xf32>
    %cst_131 = arith.constant 9.99999974E-6 : f32
    %158 = vector.broadcast %cst_131 : f32 to vector<1x128xf32>
    %159 = arith.addf %157, %158 : vector<1x128xf32>
    %160 = math.rsqrt %159 : vector<1x128xf32>
    %c0_132 = arith.constant 0 : index
    %c128_133 = arith.constant 128 : index
    %161 = vector.load %arg4[%c0_132, %c128_133] : memref<1x256xf32, #tpu.memory_space<vmem>>, vector<1x128xf32>
    %162 = arith.mulf %161, %160 : vector<1x128xf32>
    %163 = vector.broadcast %162 : vector<1x128xf32> to vector<64x128xf32>
    %164 = arith.mulf %152, %163 : vector<64x128xf32>
    %c0_134 = arith.constant 0 : index
    %c128_135 = arith.constant 128 : index
    %165 = vector.load %arg5[%c0_134, %c128_135] : memref<1x256xf32, #tpu.memory_space<vmem>>, vector<1x128xf32>
    %166 = vector.broadcast %165 : vector<1x128xf32> to vector<64x128xf32>
    %167 = arith.addf %164, %166 : vector<64x128xf32>
    %cst_136 = arith.constant 0.000000e+00 : f32
    %168 = vector.broadcast %cst_136 : f32 to vector<64x128xf32>
    %169 = arith.maximumf %167, %168 : vector<64x128xf32>
    %170 = arith.truncf %169 : vector<64x128xf32> to vector<64x128xbf16>
    %c0_137 = arith.constant 0 : index
    %c128_138 = arith.constant 128 : index
    %171 = vector.load %arg11[%c0_137, %c128_138] : memref<64x256xbf16, #tpu.memory_space<vmem>>, vector<64x128xbf16>
    tpu.vector_store %arg11[%c0_137, %c128_138], %170 {strides = array<i32>} : memref<64x256xbf16, #tpu.memory_space<vmem>>, vector<64x128xbf16>,
    %c0_i32_139 = arith.constant 0 : i32
    %c0_i32_140 = arith.constant 0 : i32
    %c2_i32_141 = arith.constant 2 : i32
    %c0_i32_142 = arith.constant 0 : i32
    %c0_i32_143 = arith.constant 0 : i32
    %c0_i32_144 = arith.constant 0 : i32
    %172 = tpu.memref_slice %arg8[%c0_i32_139, %c0_i32_143, %c0_i32_144] : memref<2x256x128xbf16, #tpu.memory_space<any>> -> memref<1x256x128xbf16, #tpu.memory_space<any>>
    %173 = tpu.memref_squeeze %172 : memref<1x256x128xbf16, #tpu.memory_space<any>> -> memref<256x128xbf16, #tpu.memory_space<any>>
    %c0_i32_145 = arith.constant 0 : i32
    %c0_i32_146 = arith.constant 0 : i32
    %174 = tpu.memref_slice %arg14[%c0_i32_140, %c0_i32_145, %c0_i32_146] : memref<2x256x128xbf16, #tpu.memory_space<vmem>> -> memref<1x256x128xbf16, #tpu.memory_space<vmem>>
    %175 = tpu.memref_squeeze %174 : memref<1x256x128xbf16, #tpu.memory_space<vmem>> -> memref<256x128xbf16, #tpu.memory_space<vmem>>
    %176 = tpu.memref_slice %arg15[%c2_i32_141, %c0_i32_142] : memref<3x2x!tpu.dma_semaphore, #tpu.memory_space<semaphore_mem>> -> memref<1x1x!tpu.dma_semaphore, #tpu.memory_space<semaphore_mem>>
    %177 = tpu.memref_squeeze %176 : memref<1x1x!tpu.dma_semaphore, #tpu.memory_space<semaphore_mem>> -> memref<!tpu.dma_semaphore, #tpu.memory_space<semaphore_mem>>
    tpu.wait_dma2 semaphore(%177 : memref<!tpu.dma_semaphore, #tpu.memory_space<semaphore_mem>>) src(%173 : memref<256x128xbf16, #tpu.memory_space<any>>) dst(%175 : memref<256x128xbf16, #tpu.memory_space<vmem>>)
    %c1_i32_147 = arith.constant 1 : i32
    %c1_i32_148 = arith.constant 1 : i32
    %c2_i32_149 = arith.constant 2 : i32
    %c1_i32_150 = arith.constant 1 : i32
    %c0_i32_151 = arith.constant 0 : i32
    %c0_i32_152 = arith.constant 0 : i32
    %178 = tpu.memref_slice %arg8[%c1_i32_147, %c0_i32_151, %c0_i32_152] : memref<2x256x128xbf16, #tpu.memory_space<any>> -> memref<1x256x128xbf16, #tpu.memory_space<any>>
    %179 = tpu.memref_squeeze %178 : memref<1x256x128xbf16, #tpu.memory_space<any>> -> memref<256x128xbf16, #tpu.memory_space<any>>
    %c0_i32_153 = arith.constant 0 : i32
    %c0_i32_154 = arith.constant 0 : i32
    %180 = tpu.memref_slice %arg14[%c1_i32_148, %c0_i32_153, %c0_i32_154] : memref<2x256x128xbf16, #tpu.memory_space<vmem>> -> memref<1x256x128xbf16, #tpu.memory_space<vmem>>
    %181 = tpu.memref_squeeze %180 : memref<1x256x128xbf16, #tpu.memory_space<vmem>> -> memref<256x128xbf16, #tpu.memory_space<vmem>>
    %182 = tpu.memref_slice %arg15[%c2_i32_149, %c1_i32_150] : memref<3x2x!tpu.dma_semaphore, #tpu.memory_space<semaphore_mem>> -> memref<1x1x!tpu.dma_semaphore, #tpu.memory_space<semaphore_mem>>
    %183 = tpu.memref_squeeze %182 : memref<1x1x!tpu.dma_semaphore, #tpu.memory_space<semaphore_mem>> -> memref<!tpu.dma_semaphore, #tpu.memory_space<semaphore_mem>>
    tpu.enqueue_dma source(%179 : memref<256x128xbf16, #tpu.memory_space<any>>) target(%181 : memref<256x128xbf16, #tpu.memory_space<vmem>>) target_semaphore(%183 : memref<!tpu.dma_semaphore, #tpu.memory_space<semaphore_mem>>)
    %c0_155 = arith.constant 0 : index
    %c0_156 = arith.constant 0 : index
    %184 = vector.load %arg11[%c0_155, %c0_156] : memref<64x256xbf16, #tpu.memory_space<vmem>>, vector<64x256xbf16>
    %c0_157 = arith.constant 0 : index
    %c0_158 = arith.constant 0 : index
    %c0_159 = arith.constant 0 : index
    %185 = vector.load %arg14[%c0_157, %c0_158, %c0_159] : memref<2x256x128xbf16, #tpu.memory_space<vmem>>, vector<1x256x128xbf16>
    %186 = vector.shape_cast %185 : vector<1x256x128xbf16> to vector<256x128xbf16>
    %cst_160 = arith.constant dense<0.000000e+00> : vector<64x128xf32>
    %187 = tpu.matmul %184, %186, %cst_160 {dimension_numbers = #tpu.dot_dimension_numbers<[1], [0], [0], [1], [0, 0, 1, 1], [], []>} : vector<64x256xbf16>, vector<256x128xbf16>, vector<64x128xf32> -> vector<64x128xf32>
    %cst_161 = arith.constant dense<0.000000e+00> : vector<128xf32>
    %188 = vector.multi_reduction <add>, %187, %cst_161 [0] : vector<64x128xf32> to vector<128xf32>
    %189 = vector.shape_cast %188 : vector<128xf32> to vector<1x128xf32>
    %cst_162 = arith.constant 6.400000e+01 : f32
    %190 = vector.broadcast %cst_162 : f32 to vector<1x128xf32>
    %191 = arith.divf %189, %190 : vector<1x128xf32>
    %192 = vector.broadcast %191 : vector<1x128xf32> to vector<64x128xf32>
    %193 = arith.subf %187, %192 : vector<64x128xf32>
    %194 = arith.mulf %193, %193 : vector<64x128xf32>
    %cst_163 = arith.constant dense<0.000000e+00> : vector<128xf32>
    %195 = vector.multi_reduction <add>, %194, %cst_163 [0] : vector<64x128xf32> to vector<128xf32>
    %196 = vector.shape_cast %195 : vector<128xf32> to vector<1x128xf32>
    %cst_164 = arith.constant 6.400000e+01 : f32
    %197 = vector.broadcast %cst_164 : f32 to vector<1x128xf32>
    %198 = arith.divf %196, %197 : vector<1x128xf32>
    %cst_165 = arith.constant 9.99999974E-6 : f32
    %199 = vector.broadcast %cst_165 : f32 to vector<1x128xf32>
    %200 = arith.addf %198, %199 : vector<1x128xf32>
    %201 = math.rsqrt %200 : vector<1x128xf32>
    %202 = vector.broadcast %201 : vector<1x128xf32> to vector<64x128xf32>
    %203 = arith.mulf %193, %202 : vector<64x128xf32>
    %c0_166 = arith.constant 0 : index
    %c0_167 = arith.constant 0 : index
    %c0_168 = arith.constant 0 : index
    %204 = vector.load %arg9[%c0_166, %c0_167, %c0_168] : memref<1x64x256xf32, #tpu.memory_space<vmem>>, vector<1x64x128xf32>
    %205 = vector.shape_cast %204 : vector<1x64x128xf32> to vector<64x128xf32>
    %206 = vector.shape_cast %203 : vector<64x128xf32> to vector<1x64x128xf32>
    tpu.vector_store %arg9[%c0_166, %c0_167, %c0_168], %206 {strides = array<i32>} : memref<1x64x256xf32, #tpu.memory_space<vmem>>, vector<1x64x128xf32>,
    %c1_i32_169 = arith.constant 1 : i32
    %c1_i32_170 = arith.constant 1 : i32
    %c2_i32_171 = arith.constant 2 : i32
    %c1_i32_172 = arith.constant 1 : i32
    %c0_i32_173 = arith.constant 0 : i32
    %c0_i32_174 = arith.constant 0 : i32
    %207 = tpu.memref_slice %arg8[%c1_i32_169, %c0_i32_173, %c0_i32_174] : memref<2x256x128xbf16, #tpu.memory_space<any>> -> memref<1x256x128xbf16, #tpu.memory_space<any>>
    %208 = tpu.memref_squeeze %207 : memref<1x256x128xbf16, #tpu.memory_space<any>> -> memref<256x128xbf16, #tpu.memory_space<any>>
    %c0_i32_175 = arith.constant 0 : i32
    %c0_i32_176 = arith.constant 0 : i32
    %209 = tpu.memref_slice %arg14[%c1_i32_170, %c0_i32_175, %c0_i32_176] : memref<2x256x128xbf16, #tpu.memory_space<vmem>> -> memref<1x256x128xbf16, #tpu.memory_space<vmem>>
    %210 = tpu.memref_squeeze %209 : memref<1x256x128xbf16, #tpu.memory_space<vmem>> -> memref<256x128xbf16, #tpu.memory_space<vmem>>
    %211 = tpu.memref_slice %arg15[%c2_i32_171, %c1_i32_172] : memref<3x2x!tpu.dma_semaphore, #tpu.memory_space<semaphore_mem>> -> memref<1x1x!tpu.dma_semaphore, #tpu.memory_space<semaphore_mem>>
    %212 = tpu.memref_squeeze %211 : memref<1x1x!tpu.dma_semaphore, #tpu.memory_space<semaphore_mem>> -> memref<!tpu.dma_semaphore, #tpu.memory_space<semaphore_mem>>
    tpu.wait_dma2 semaphore(%212 : memref<!tpu.dma_semaphore, #tpu.memory_space<semaphore_mem>>) src(%208 : memref<256x128xbf16, #tpu.memory_space<any>>) dst(%210 : memref<256x128xbf16, #tpu.memory_space<vmem>>)
    %c0_177 = arith.constant 0 : index
    %c0_178 = arith.constant 0 : index
    %213 = vector.load %arg11[%c0_177, %c0_178] : memref<64x256xbf16, #tpu.memory_space<vmem>>, vector<64x256xbf16>
    %c1_179 = arith.constant 1 : index
    %c0_180 = arith.constant 0 : index
    %c0_181 = arith.constant 0 : index
    %214 = vector.load %arg14[%c1_179, %c0_180, %c0_181] : memref<2x256x128xbf16, #tpu.memory_space<vmem>>, vector<1x256x128xbf16>
    %215 = vector.shape_cast %214 : vector<1x256x128xbf16> to vector<256x128xbf16>
    %cst_182 = arith.constant dense<0.000000e+00> : vector<64x128xf32>
    %216 = tpu.matmul %213, %215, %cst_182 {dimension_numbers = #tpu.dot_dimension_numbers<[1], [0], [0], [1], [0, 0, 1, 1], [], []>} : vector<64x256xbf16>, vector<256x128xbf16>, vector<64x128xf32> -> vector<64x128xf32>
    %cst_183 = arith.constant dense<0.000000e+00> : vector<128xf32>
    %217 = vector.multi_reduction <add>, %216, %cst_183 [0] : vector<64x128xf32> to vector<128xf32>
    %218 = vector.shape_cast %217 : vector<128xf32> to vector<1x128xf32>
    %cst_184 = arith.constant 6.400000e+01 : f32
    %219 = vector.broadcast %cst_184 : f32 to vector<1x128xf32>
    %220 = arith.divf %218, %219 : vector<1x128xf32>
    %221 = vector.broadcast %220 : vector<1x128xf32> to vector<64x128xf32>
    %222 = arith.subf %216, %221 : vector<64x128xf32>
    %223 = arith.mulf %222, %222 : vector<64x128xf32>
    %cst_185 = arith.constant dense<0.000000e+00> : vector<128xf32>
    %224 = vector.multi_reduction <add>, %223, %cst_185 [0] : vector<64x128xf32> to vector<128xf32>
    %225 = vector.shape_cast %224 : vector<128xf32> to vector<1x128xf32>
    %cst_186 = arith.constant 6.400000e+01 : f32
    %226 = vector.broadcast %cst_186 : f32 to vector<1x128xf32>
    %227 = arith.divf %225, %226 : vector<1x128xf32>
    %cst_187 = arith.constant 9.99999974E-6 : f32
    %228 = vector.broadcast %cst_187 : f32 to vector<1x128xf32>
    %229 = arith.addf %227, %228 : vector<1x128xf32>
    %230 = math.rsqrt %229 : vector<1x128xf32>
    %231 = vector.broadcast %230 : vector<1x128xf32> to vector<64x128xf32>
    %232 = arith.mulf %222, %231 : vector<64x128xf32>
    %c0_188 = arith.constant 0 : index
    %c0_189 = arith.constant 0 : index
    %c128_190 = arith.constant 128 : index
    %233 = vector.load %arg9[%c0_188, %c0_189, %c128_190] : memref<1x64x256xf32, #tpu.memory_space<vmem>>, vector<1x64x128xf32>
    %234 = vector.shape_cast %233 : vector<1x64x128xf32> to vector<64x128xf32>
    %235 = vector.shape_cast %232 : vector<64x128xf32> to vector<1x64x128xf32>
    tpu.vector_store %arg9[%c0_188, %c0_189, %c128_190], %235 {strides = array<i32>} : memref<1x64x256xf32, #tpu.memory_space<vmem>>, vector<1x64x128xf32>,
    return
  }
  func.func @transform_0(%arg0: i32) -> (i32, i32, i32) {
    %c0_i32 = arith.constant 0 : i32
    %c0_i32_0 = arith.constant 0 : i32
    %c0_i32_1 = arith.constant 0 : i32
    return %arg0, %c0_i32, %c0_i32_0 : i32, i32, i32
  }
  func.func @transform_1(%arg0: i32) -> (i32, i32) {
    %c0_i32 = arith.constant 0 : i32
    %c0_i32_0 = arith.constant 0 : i32
    %c0_i32_1 = arith.constant 0 : i32
    return %c0_i32, %c0_i32_0 : i32, i32
  }
  func.func @transform_2(%arg0: i32) -> (i32, i32) {
    %c0_i32 = arith.constant 0 : i32
    %c0_i32_0 = arith.constant 0 : i32
    %c0_i32_1 = arith.constant 0 : i32
    return %c0_i32, %c0_i32_0 : i32, i32
  }
  func.func @transform_3(%arg0: i32) -> (i32, i32) {
    %c0_i32 = arith.constant 0 : i32
    %c0_i32_0 = arith.constant 0 : i32
    %c0_i32_1 = arith.constant 0 : i32
    return %c0_i32, %c0_i32_0 : i32, i32
  }
  func.func @transform_4(%arg0: i32) -> (i32, i32) {
    %c0_i32 = arith.constant 0 : i32
    %c0_i32_0 = arith.constant 0 : i32
    %c0_i32_1 = arith.constant 0 : i32
    return %c0_i32, %c0_i32_0 : i32, i32
  }
  func.func @transform_8(%arg0: i32) -> (i32, i32, i32) {
    %c0_i32 = arith.constant 0 : i32
    %c0_i32_0 = arith.constant 0 : i32
    %c0_i32_1 = arith.constant 0 : i32
    return %arg0, %c0_i32, %c0_i32_0 : i32, i32, i32
  }
}

</mosaic_0001>

<llo_original>
// kernel: tpu_custom_call.1
$region0: #{tpu_custom_call.1}
  #allocation0 [shape = 'u32[]', space=smem, size = 0x4, offset = 0x4, fixed_abs, tag = 'smem constant byte address 0x4 - core index']
  #allocation1 [shape = 'u32[144,128]{1,0:T(1,128)}', space=vmem, size = 0x12000, scoped, tag = 'internal scratch']
  #allocation2 [shape = 'bf16[64,256]{1,0:T(16,128)(2,1)}', space=vmem, size = 0x8000, scoped, tag = 'scratch operand']
  #allocation3 [shape = 'bf16[64,256]{1,0:T(16,128)(2,1)}', space=vmem, size = 0x8000, scoped, tag = 'scratch operand']
  #allocation4 [shape = 'bf16[2,256,128]{2,1,0:T(16,128)(2,1)}', space=vmem, size = 0x20000, scoped, tag = 'scratch operand']
  #allocation5 [shape = 'bf16[2,256,128]{2,1,0:T(16,128)(2,1)}', space=vmem, size = 0x20000, scoped, tag = 'scratch operand']
  #allocation6 [shape = 'bf16[2,256,128]{2,1,0:T(16,128)(2,1)}', space=vmem, size = 0x20000, scoped, tag = 'scratch operand']
  #allocation7 [shape = 's32[6]{0}', space=sflag, size = 0x18, scoped, tag = 'scratch operand']
  #allocation12 [shape = 's32[]', space=sflag, size = 0x4, offset = 0, fixed_abs, tag = 'sflag constant byte address 0x0 - dummy sync flag']
  #allocation13 [shape = 's32[]', space=sflag, size = 0x4, offset = 0, fixed_abs, tag = 'sflag constant byte address 0x0 - dummy sync flag']
  #allocation14 [shape = 'u32[]', space=smem, size = 0x4, offset = 0x44, fixed_abs, tag = 'smem constant byte address 0x44 - assertion arg 0']
  #allocation15 [shape = 'u32[]', space=smem, size = 0x4, offset = 0x48, fixed_abs, tag = 'smem constant byte address 0x48 - assertion arg 1']
  #allocation16 [shape = 's32[]', space=sflag, size = 0x4, offset = 0, fixed_abs, tag = 'sflag constant byte address 0x0 - dummy sync flag']
  #allocation17 [shape = 's32[]', space=sflag, size = 0x4, offset = 0, fixed_abs, tag = 'sflag constant byte address 0x0 - dummy sync flag']
  #allocation18 [shape = 's32[]', space=sflag, size = 0x4, offset = 0, fixed_abs, tag = 'sflag constant byte address 0x0 - dummy sync flag']
  #allocation19 [shape = 's32[]', space=sflag, size = 0x4, offset = 0, fixed_abs, tag = 'sflag constant byte address 0x0 - dummy sync flag']
  #allocation20 [shape = 's32[]', space=sflag, size = 0x4, offset = 0, fixed_abs, tag = 'sflag constant byte address 0x0 - dummy sync flag']
  #allocation21 [shape = 's32[]', space=sflag, size = 0x4, offset = 0, fixed_abs, tag = 'sflag constant byte address 0x0 - dummy sync flag']
  #allocation22 [shape = 's32[]', space=sflag, size = 0x4, offset = 0, fixed_abs, tag = 'sflag constant byte address 0x0 - dummy sync flag']
  #allocation23 [shape = 's32[]', space=sflag, size = 0x4, offset = 0, fixed_abs, tag = 'sflag constant byte address 0x0 - dummy sync flag']
  #allocation24 [shape = 's32[]', space=sflag, size = 0x4, offset = 0, fixed_abs, tag = 'sflag constant byte address 0x0 - dummy sync flag']
  #allocation25 [shape = 's32[]', space=sflag, size = 0x4, offset = 0, fixed_abs, tag = 'sflag constant byte address 0x0 - dummy sync flag']
  %s0 = inlined_call_operand.hbm [shape: bf16[1,64,256], index: 0, kind: input, shape index: {}]
  %s1 = inlined_call_operand.vmem [shape: f32[1,256], index: 1, kind: input, shape index: {}]
  %s2 = inlined_call_operand.vmem [shape: f32[1,256], index: 2, kind: input, shape index: {}]
  %s3 = inlined_call_operand.vmem [shape: f32[1,256], index: 3, kind: input, shape index: {}]
  %s4 = inlined_call_operand.vmem [shape: f32[1,256], index: 4, kind: input, shape index: {}]
  %s5 = inlined_call_operand.hbm [shape: bf16[2,256,128], index: 5, kind: input, shape index: {}]
  %s6 = inlined_call_operand.hbm [shape: bf16[2,256,128], index: 6, kind: input, shape index: {}]
  %s7 = inlined_call_operand.hbm [shape: bf16[2,256,128], index: 7, kind: input, shape index: {}]
  %s8 = inlined_call_operand.hbm [shape: f32[1,64,256], index: 8, kind: output, shape index: {}]
  %s9 = sld [smem:[#allocation0]]
  $region58: #{tpu_custom_call.1} parent=0
    _
  %s11 = ssub.s32 1, %s9
  %s12 = scalar_select 0, %s11, %s9
  $region1: #{tpu_custom_call.1} parent=0
    #allocation8 [shape = 'u8[32768]{0}', space=vmem, size = 0x8000, scoped, tag = 'input window, operand 0, single buffered']
    #allocation9 [shape = 's32[1]{0}', space=sflag, size = 0x4, scoped, tag = 'scoped memory for tpu_custom_call.1']
    #allocation10 [shape = 's32[1]{0}', space=sflag, size = 0x4, scoped, tag = 'scoped memory for tpu_custom_call.1']
    #allocation11 [shape = 'u8[65536]{0}', space=vmem, size = 0x10000, scoped, tag = 'output window, operand 0, single buffered']
    %13 = vsyncpa [#allocation9], 0
    %14 = vsyncpa [#allocation10], 0
    // Predicated region
    $region2: #{tpu_custom_call.1} parent=1 // pred_check
      _
    $region3: #{tpu_custom_call.1} parent=1 // pred_check_branch
      %16 = sbr.rel (0) target = $region5
    $region4: #{tpu_custom_call.1} parent=1 // pred_region
      %s18 = ssub.s32 1024, 1024
      %19 = vsyncadd [#allocation9], %s18
      %s20 = sshll.u32 [#allocation8], 4
      %s21 = int_to_ptr.vmem [resolvable:$true] %s20
      %26 = dma.hbm_to_vmem [thread:$0]  %s0, 1024, %s21, [#allocation9], 128, 128, 8
    $region5: #{tpu_custom_call.1} parent=1 // pred_fallthru
      _
    // Predicated region
    $region6: #{tpu_custom_call.1} parent=1 // pred_check
      _
    $region7: #{tpu_custom_call.1} parent=1 // pred_check_branch
      %28 = sbr.rel (0) target = $region9
    $region8: #{tpu_custom_call.1} parent=1 // pred_region
      _
    $region9: #{tpu_custom_call.1} parent=1 // pred_fallthru
      _
    // Predicated region
    $region10: #{tpu_custom_call.1} parent=1 // pred_check
      _
    $region11: #{tpu_custom_call.1} parent=1 // pred_check_branch
      %30 = sbr.rel (0) target = $region13
    $region12: #{tpu_custom_call.1} parent=1 // pred_region
      _
    $region13: #{tpu_custom_call.1} parent=1 // pred_fallthru
      _
    // Predicated region
    $region14: #{tpu_custom_call.1} parent=1 // pred_check
      _
    $region15: #{tpu_custom_call.1} parent=1 // pred_check_branch
      %32 = sbr.rel (0) target = $region17
    $region16: #{tpu_custom_call.1} parent=1 // pred_region
      _
    $region17: #{tpu_custom_call.1} parent=1 // pred_fallthru
      _
    // Predicated region
    $region18: #{tpu_custom_call.1} parent=1 // pred_check
      _
    $region19: #{tpu_custom_call.1} parent=1 // pred_check_branch
      %34 = sbr.rel (0) target = $region21
    $region20: #{tpu_custom_call.1} parent=1 // pred_region
      _
    $region21: #{tpu_custom_call.1} parent=1 // pred_fallthru
      _
    // Predicated region
    $region22: #{tpu_custom_call.1} parent=1 // pred_check
      _
    $region23: #{tpu_custom_call.1} parent=1 // pred_check_branch
      %36 = sbr.rel (0) target = $region25
    $region24: #{tpu_custom_call.1} parent=1 // pred_region
      %37 = dma.done [#allocation9], 1024
    $region25: #{tpu_custom_call.1} parent=1 // pred_fallthru
      _
    // Predicated region
    $region26: #{tpu_custom_call.1} parent=1 // pred_check
      _
    $region27: #{tpu_custom_call.1} parent=1 // pred_check_branch
      %40 = sbr.rel target = $region29
    $region28: #{tpu_custom_call.1} parent=1 // pred_region
      %41 = sst [smem:[#allocation14]] [#allocation13]
      %42 = sst [smem:[#allocation15]] [#allocation12]
    $region29: #{tpu_custom_call.1} parent=1 // pred_fallthru
      _
    %44 = shalt.err (0)
    %s46 = sshll.u32 [#allocation4], 4
    %s47 = int_to_ptr.vmem [resolvable:$true] %s46
    %49 = dma.hbm_to_vmem [thread:$0]  %s5, 2048, %s47, [#allocation7]
    %s50 = smul.u32 4, 32
    %s51 = smul.u32 %s50, 1
    %s52 = sshll.u32 %s51, 4
    %53 = dma.done [#allocation7], %s52
    %s54 = scalar_lea.hbm %s5, 2048
    %s55 = scalar_lea.vmem [#allocation4], 128
    %s56 = scalar_lea.sflag [#allocation7], 1
    // Predicated region
    $region30: #{tpu_custom_call.1} parent=1 // pred_check
      _
    $region31: #{tpu_custom_call.1} parent=1 // pred_check_branch
      %58 = sbr.rel target = $region33
    $region32: #{tpu_custom_call.1} parent=1 // pred_region
      %59 = sst [smem:[#allocation14]] [#allocation17]
      %60 = sst [smem:[#allocation15]] [#allocation16]
    $region33: #{tpu_custom_call.1} parent=1 // pred_fallthru
      _
    %62 = shalt.err (0)
    %s64 = sshll.u32 %s55, 4
    %s65 = int_to_ptr.vmem [resolvable:$true] %s64
    %67 = dma.hbm_to_vmem [thread:$0]  %s54, 2048, %s65, %s56
    %v68 = vld [vmem:[#allocation8] sm:$0xff]
    %v69 = vld [vmem:[#allocation8 + $0x8] sm:$0xff]
    %v70 = vld [vmem:[#allocation8 + $0x10] sm:$0xff]
    %v71 = vld [vmem:[#allocation8 + $0x18] sm:$0xff]
    %v72 = vld [vmem:[#allocation8 + $0x20] sm:$0xff]
    %v73 = vld [vmem:[#allocation8 + $0x28] sm:$0xff]
    %v74 = vld [vmem:[#allocation8 + $0x30] sm:$0xff]
    %v75 = vld [vmem:[#allocation8 + $0x38] sm:$0xff]
    %v76 = vld [vmem:[#allocation4] sm:$0xff]
    %v77 = vld [vmem:[#allocation4 + $0x8] sm:$0xff]
    %v78 = vld [vmem:[#allocation4 + $0x10] sm:$0xff]
    %v79 = vld [vmem:[#allocation4 + $0x18] sm:$0xff]
    %v80 = vld [vmem:[#allocation4 + $0x20] sm:$0xff]
    %v81 = vld [vmem:[#allocation4 + $0x28] sm:$0xff]
    %v82 = vld [vmem:[#allocation4 + $0x30] sm:$0xff]
    %v83 = vld [vmem:[#allocation4 + $0x38] sm:$0xff]
    %v84 = vld [vmem:[#allocation4 + $0x40] sm:$0xff]
    %v85 = vld [vmem:[#allocation4 + $0x48] sm:$0xff]
    %v86 = vld [vmem:[#allocation4 + $0x50] sm:$0xff]
    %v87 = vld [vmem:[#allocation4 + $0x58] sm:$0xff]
    %v88 = vld [vmem:[#allocation4 + $0x60] sm:$0xff]
    %v89 = vld [vmem:[#allocation4 + $0x68] sm:$0xff]
    %v90 = vld [vmem:[#allocation4 + $0x70] sm:$0xff]
    %v91 = vld [vmem:[#allocation4 + $0x78] sm:$0xff]
    %v100 = vunpack.c.l.b16 %v68
    %v101 = vunpack.c.h.b16 %v68
    %v102 = vunpack.c.l.b16 %v69
    %v103 = vunpack.c.h.b16 %v69
    %v104 = vunpack.c.l.b16 %v70
    %v105 = vunpack.c.h.b16 %v70
    %v106 = vunpack.c.l.b16 %v71
    %v107 = vunpack.c.h.b16 %v71
    %v108 = vunpack.c.l.b16 %v72
    %v109 = vunpack.c.h.b16 %v72
    %v110 = vunpack.c.l.b16 %v73
    %v111 = vunpack.c.h.b16 %v73
    %v112 = vunpack.c.l.b16 %v74
    %v113 = vunpack.c.h.b16 %v74
    %v114 = vunpack.c.l.b16 %v75
    %v115 = vunpack.c.h.b16 %v75
    %v116 = vpack.c.b16 %v102, %v100
    %v117 = vpack.c.b16 %v103, %v101
    %v118 = vpack.c.b16 %v106, %v104
    %v119 = vpack.c.b16 %v107, %v105
    %v120 = vpack.c.b16 %v110, %v108
    %v121 = vpack.c.b16 %v111, %v109
    %v122 = vpack.c.b16 %v114, %v112
    %v123 = vpack.c.b16 %v115, %v113
    %132 = vmatprep.subr.bf16.mxu0 0
    %133 = vmatpush1.bf16.msra.mxu0 %v76
    %134 = vmatprep.subr.bf16.mxu0 0
    %135 = vmatpush1.bf16.msra.mxu0 %v77
    %136 = vmatprep.subr.bf16.mxu0 0
    %137 = vmatpush1.bf16.msra.mxu0 %v78
    %138 = vmatprep.subr.bf16.mxu0 0
    %139 = vmatpush1.bf16.msra.mxu0 %v79
    %140 = vmatprep.subr.bf16.mxu0 0
    %141 = vmatpush1.bf16.msra.mxu0 %v80
    %142 = vmatprep.subr.bf16.mxu0 0
    %143 = vmatpush1.bf16.msra.mxu0 %v81
    %144 = vmatprep.subr.bf16.mxu0 0
    %145 = vmatpush1.bf16.msra.mxu0 %v82
    %146 = vmatprep.subr.bf16.mxu0 0
    %147 = vmatpush1.bf16.msra.mxu0 %v83
    %148 = vmatprep.subr.bf16.mxu0 0
    %149 = vmatpush1.bf16.msra.mxu0 %v84
    %150 = vmatprep.subr.bf16.mxu0 0
    %151 = vmatpush1.bf16.msra.mxu0 %v85
    %152 = vmatprep.subr.bf16.mxu0 0
    %153 = vmatpush1.bf16.msra.mxu0 %v86
    %154 = vmatprep.subr.bf16.mxu0 0
    %155 = vmatpush1.bf16.msra.mxu0 %v87
    %156 = vmatprep.subr.bf16.mxu0 0
    %157 = vmatpush1.bf16.msra.mxu0 %v88
    %158 = vmatprep.subr.bf16.mxu0 0
    %159 = vmatpush1.bf16.msra.mxu0 %v89
    %160 = vmatprep.subr.bf16.mxu0 0
    %161 = vmatpush1.bf16.msra.mxu0 %v90
    %162 = vmatprep.subr.bf16.mxu0 0
    %163 = vmatpush1.bf16.msra.mxu0 %v91
    %164 = vmatprep.mubr.bf16.mxu0 %v117
    %165 = vmatmul.mubr.bf16.gmra.mrb[0].mxu0 %v116
    %v166 = vpop.f32.mrb[0].mxu0
    %v167 = vadd.f32 0.0, %v166
    %v168 = vpop.f32.mrb[0].mxu0
    %v169 = vpop.f32.mrb[0].mxu0
    %v170 = vadd.f32 0.0, %v169
    %v171 = vpop.f32.mrb[0].mxu0
    %172 = vmatprep.mubr.bf16.mxu0 %v119
    %173 = vmatmul.mubr.bf16.gmra.mrb[0].mxu0 %v118
    %v174 = vpop.f32.mrb[0].mxu0
    %v175 = vadd.f32 0.0, %v174
    %v176 = vpop.f32.mrb[0].mxu0
    %v177 = vpop.f32.mrb[0].mxu0
    %v178 = vadd.f32 0.0, %v177
    %v179 = vpop.f32.mrb[0].mxu0
    %180 = vmatprep.mubr.bf16.mxu0 %v121
    %181 = vmatmul.mubr.bf16.gmra.mrb[0].mxu0 %v120
    %v182 = vpop.f32.mrb[0].mxu0
    %v183 = vadd.f32 0.0, %v182
    %v184 = vpop.f32.mrb[0].mxu0
    %v185 = vpop.f32.mrb[0].mxu0
    %v186 = vadd.f32 0.0, %v185
    %v187 = vpop.f32.mrb[0].mxu0
    %188 = vmatprep.mubr.bf16.mxu0 %v123
    %189 = vmatmul.mubr.bf16.gmra.mrb[0].mxu0 %v122
    %v190 = vpop.f32.mrb[0].mxu0
    %v191 = vadd.f32 0.0, %v190
    %v192 = vpop.f32.mrb[0].mxu0
    %v193 = vpop.f32.mrb[0].mxu0
    %v194 = vadd.f32 0.0, %v193
    %v195 = vpop.f32.mrb[0].mxu0
    %196 = vdwg.mxu0
    %v197 = vadd.f32 %v167, %v170
    %v198 = vadd.f32 %v197, %v175
    %v199 = vadd.f32 %v198, %v178
    %v200 = vadd.f32 %v199, %v183
    %v201 = vadd.f32 %v200, %v186
    %v202 = vadd.f32 %v201, %v191
    %v203 = vadd.f32 %v202, %v194
    %v204 = vrot.slane %v203, 4
    %v205 = vadd.f32 %v203, %v204
    %v206 = vrot.slane %v205, 2
    %v207 = vadd.f32 %v205, %v206
    %v208 = vrot.slane %v207, 1
    %v209 = vadd.f32 %v207, %v208
    %v210 = vrcp.pop 64.0
    %v211 = vmul.f32 %v209, %v210
    %v212 = vsub.f32 %v167, %v211
    %v213 = vsub.f32 %v170, %v211
    %v214 = vsub.f32 %v175, %v211
    %v215 = vsub.f32 %v178, %v211
    %v216 = vsub.f32 %v183, %v211
    %v217 = vsub.f32 %v186, %v211
    %v218 = vsub.f32 %v191, %v211
    %v219 = vsub.f32 %v194, %v211
    %v220 = vmul.f32 %v212, %v212
    %v221 = vmul.f32 %v213, %v213
    %v222 = vmul.f32 %v214, %v214
    %v223 = vmul.f32 %v215, %v215
    %v224 = vmul.f32 %v216, %v216
    %v225 = vmul.f32 %v217, %v217
    %v226 = vmul.f32 %v218, %v218
    %v227 = vmul.f32 %v219, %v219
    %v228 = vadd.f32 %v220, %v221
    %v229 = vadd.f32 %v228, %v222
    %v230 = vadd.f32 %v229, %v223
    %v231 = vadd.f32 %v230, %v224
    %v232 = vadd.f32 %v231, %v225
    %v233 = vadd.f32 %v232, %v226
    %v234 = vadd.f32 %v233, %v227
    %v235 = vrot.slane %v234, 4
    %v236 = vadd.f32 %v234, %v235
    %v237 = vrot.slane %v236, 2
    %v238 = vadd.f32 %v236, %v237
    %v239 = vrot.slane %v238, 1
    %v240 = vadd.f32 %v238, %v239
    %v241 = vmul.f32 %v240, %v210
    %v242 = vadd.f32 %v241, 1e-05
    %v243 = vrsqrt.pop %v242
    %v244 = vld [vmem:[%s1] sm:$0x1]
    %v245 = vmul.f32 %v244, %v243
    %v247 = vlaneseq
    %v248 = vshrl.u32 %v247, 7
    %v249 = vsub.s32 0, %v248
    %v250 = vrot.slane %v245, %v249
    %v252 = vmul.f32 %v212, %v250
    %v253 = vmul.f32 %v213, %v250
    %v254 = vmul.f32 %v214, %v250
    %v255 = vmul.f32 %v215, %v250
    %v256 = vmul.f32 %v216, %v250
    %v257 = vmul.f32 %v217, %v250
    %v258 = vmul.f32 %v218, %v250
    %v259 = vmul.f32 %v219, %v250
    %v260 = vld [vmem:[%s2] sm:$0x1]
    %v262 = vlaneseq
    %v263 = vshrl.u32 %v262, 7
    %v264 = vsub.s32 0, %v263
    %v265 = vrot.slane %v260, %v264
    %v267 = vadd.f32 %v252, %v265
    %v268 = vadd.f32 %v253, %v265
    %v269 = vadd.f32 %v254, %v265
    %v270 = vadd.f32 %v255, %v265
    %v271 = vadd.f32 %v256, %v265
    %v272 = vadd.f32 %v257, %v265
    %v273 = vadd.f32 %v258, %v265
    %v274 = vadd.f32 %v259, %v265
    %v275 = vmax.f32 %v267, 0.0
    %v276 = vmax.f32 %v268, 0.0
    %v277 = vmax.f32 %v269, 0.0
    %v278 = vmax.f32 %v270, 0.0
    %v279 = vmax.f32 %v271, 0.0
    %v280 = vmax.f32 %v272, 0.0
    %v281 = vmax.f32 %v273, 0.0
    %v282 = vmax.f32 %v274, 0.0
    %v283 = vpack.c.bf16 %v276, %v275
    %v284 = vpack.c.bf16 %v278, %v277
    %v285 = vpack.c.bf16 %v280, %v279
    %v286 = vpack.c.bf16 %v282, %v281
    %287 = vst [vmem:[#allocation2] sm:$0xff] %v283
    %288 = vst [vmem:[#allocation2 + $0x10] sm:$0xff] %v284
    %289 = vst [vmem:[#allocation2 + $0x20] sm:$0xff] %v285
    %290 = vst [vmem:[#allocation2 + $0x30] sm:$0xff] %v286
    %s291 = sshll.u32 %s51, 4
    %292 = dma.done %s56, %s291
    %s293 = scalar_lea.sflag [#allocation7], 2
    // Predicated region
    $region34: #{tpu_custom_call.1} parent=1 // pred_check
      _
    $region35: #{tpu_custom_call.1} parent=1 // pred_check_branch
      %295 = sbr.rel target = $region37
    $region36: #{tpu_custom_call.1} parent=1 // pred_region
      %296 = sst [smem:[#allocation14]] [#allocation19]
      %297 = sst [smem:[#allocation15]] [#allocation18]
    $region37: #{tpu_custom_call.1} parent=1 // pred_fallthru
      _
    %299 = shalt.err (0)
    %s301 = sshll.u32 [#allocation5], 4
    %s302 = int_to_ptr.vmem [resolvable:$true] %s301
    %304 = dma.hbm_to_vmem [thread:$0]  %s6, 2048, %s302, %s293
    %v305 = vld [vmem:[#allocation8] sm:$0xff]
    %v306 = vld [vmem:[#allocation8 + $0x8] sm:$0xff]
    %v307 = vld [vmem:[#allocation8 + $0x10] sm:$0xff]
    %v308 = vld [vmem:[#allocation8 + $0x18] sm:$0xff]
    %v309 = vld [vmem:[#allocation8 + $0x20] sm:$0xff]
    %v310 = vld [vmem:[#allocation8 + $0x28] sm:$0xff]
    %v311 = vld [vmem:[#allocation8 + $0x30] sm:$0xff]
    %v312 = vld [vmem:[#allocation8 + $0x38] sm:$0xff]
    %v313 = vld [vmem:[%s55] sm:$0xff]
    %v314 = vld [vmem:[%s55 + $0x8] sm:$0xff]
    %v315 = vld [vmem:[%s55 + $0x10] sm:$0xff]
    %v316 = vld [vmem:[%s55 + $0x18] sm:$0xff]
    %v317 = vld [vmem:[%s55 + $0x20] sm:$0xff]
    %v318 = vld [vmem:[%s55 + $0x28] sm:$0xff]
    %v319 = vld [vmem:[%s55 + $0x30] sm:$0xff]
    %v320 = vld [vmem:[%s55 + $0x38] sm:$0xff]
    %v321 = vld [vmem:[%s55 + $0x40] sm:$0xff]
    %v322 = vld [vmem:[%s55 + $0x48] sm:$0xff]
    %v323 = vld [vmem:[%s55 + $0x50] sm:$0xff]
    %v324 = vld [vmem:[%s55 + $0x58] sm:$0xff]
    %v325 = vld [vmem:[%s55 + $0x60] sm:$0xff]
    %v326 = vld [vmem:[%s55 + $0x68] sm:$0xff]
    %v327 = vld [vmem:[%s55 + $0x70] sm:$0xff]
    %v328 = vld [vmem:[%s55 + $0x78] sm:$0xff]
    %v337 = vunpack.c.l.b16 %v305
    %v338 = vunpack.c.h.b16 %v305
    %v339 = vunpack.c.l.b16 %v306
    %v340 = vunpack.c.h.b16 %v306
    %v341 = vunpack.c.l.b16 %v307
    %v342 = vunpack.c.h.b16 %v307
    %v343 = vunpack.c.l.b16 %v308
    %v344 = vunpack.c.h.b16 %v308
    %v345 = vunpack.c.l.b16 %v309
    %v346 = vunpack.c.h.b16 %v309
    %v347 = vunpack.c.l.b16 %v310
    %v348 = vunpack.c.h.b16 %v310
    %v349 = vunpack.c.l.b16 %v311
    %v350 = vunpack.c.h.b16 %v311
    %v351 = vunpack.c.l.b16 %v312
    %v352 = vunpack.c.h.b16 %v312
    %v353 = vpack.c.b16 %v339, %v337
    %v354 = vpack.c.b16 %v340, %v338
    %v355 = vpack.c.b16 %v343, %v341
    %v356 = vpack.c.b16 %v344, %v342
    %v357 = vpack.c.b16 %v347, %v345
    %v358 = vpack.c.b16 %v348, %v346
    %v359 = vpack.c.b16 %v351, %v349
    %v360 = vpack.c.b16 %v352, %v350
    %369 = vmatprep.subr.bf16.mxu0 0
    %370 = vmatpush1.bf16.msra.mxu0 %v313
    %371 = vmatprep.subr.bf16.mxu0 0
    %372 = vmatpush1.bf16.msra.mxu0 %v314
    %373 = vmatprep.subr.bf16.mxu0 0
    %374 = vmatpush1.bf16.msra.mxu0 %v315
    %375 = vmatprep.subr.bf16.mxu0 0
    %376 = vmatpush1.bf16.msra.mxu0 %v316
    %377 = vmatprep.subr.bf16.mxu0 0
    %378 = vmatpush1.bf16.msra.mxu0 %v317
    %379 = vmatprep.subr.bf16.mxu0 0
    %380 = vmatpush1.bf16.msra.mxu0 %v318
    %381 = vmatprep.subr.bf16.mxu0 0
    %382 = vmatpush1.bf16.msra.mxu0 %v319
    %383 = vmatprep.subr.bf16.mxu0 0
    %384 = vmatpush1.bf16.msra.mxu0 %v320
    %385 = vmatprep.subr.bf16.mxu0 0
    %386 = vmatpush1.bf16.msra.mxu0 %v321
    %387 = vmatprep.subr.bf16.mxu0 0
    %388 = vmatpush1.bf16.msra.mxu0 %v322
    %389 = vmatprep.subr.bf16.mxu0 0
    %390 = vmatpush1.bf16.msra.mxu0 %v323
    %391 = vmatprep.subr.bf16.mxu0 0
    %392 = vmatpush1.bf16.msra.mxu0 %v324
    %393 = vmatprep.subr.bf16.mxu0 0
    %394 = vmatpush1.bf16.msra.mxu0 %v325
    %395 = vmatprep.subr.bf16.mxu0 0
    %396 = vmatpush1.bf16.msra.mxu0 %v326
    %397 = vmatprep.subr.bf16.mxu0 0
    %398 = vmatpush1.bf16.msra.mxu0 %v327
    %399 = vmatprep.subr.bf16.mxu0 0
    %400 = vmatpush1.bf16.msra.mxu0 %v328
    %401 = vmatprep.mubr.bf16.mxu0 %v354
    %402 = vmatmul.mubr.bf16.gmra.mrb[0].mxu0 %v353
    %v403 = vpop.f32.mrb[0].mxu0
    %v404 = vadd.f32 0.0, %v403
    %v405 = vpop.f32.mrb[0].mxu0
    %v406 = vpop.f32.mrb[0].mxu0
    %v407 = vadd.f32 0.0, %v406
    %v408 = vpop.f32.mrb[0].mxu0
    %409 = vmatprep.mubr.bf16.mxu0 %v356
    %410 = vmatmul.mubr.bf16.gmra.mrb[0].mxu0 %v355
    %v411 = vpop.f32.mrb[0].mxu0
    %v412 = vadd.f32 0.0, %v411
    %v413 = vpop.f32.mrb[0].mxu0
    %v414 = vpop.f32.mrb[0].mxu0
    %v415 = vadd.f32 0.0, %v414
    %v416 = vpop.f32.mrb[0].mxu0
    %417 = vmatprep.mubr.bf16.mxu0 %v358
    %418 = vmatmul.mubr.bf16.gmra.mrb[0].mxu0 %v357
    %v419 = vpop.f32.mrb[0].mxu0
    %v420 = vadd.f32 0.0, %v419
    %v421 = vpop.f32.mrb[0].mxu0
    %v422 = vpop.f32.mrb[0].mxu0
    %v423 = vadd.f32 0.0, %v422
    %v424 = vpop.f32.mrb[0].mxu0
    %425 = vmatprep.mubr.bf16.mxu0 %v360
    %426 = vmatmul.mubr.bf16.gmra.mrb[0].mxu0 %v359
    %v427 = vpop.f32.mrb[0].mxu0
    %v428 = vadd.f32 0.0, %v427
    %v429 = vpop.f32.mrb[0].mxu0
    %v430 = vpop.f32.mrb[0].mxu0
    %v431 = vadd.f32 0.0, %v430
    %v432 = vpop.f32.mrb[0].mxu0
    %433 = vdwg.mxu0
    %v434 = vadd.f32 %v404, %v407
    %v435 = vadd.f32 %v434, %v412
    %v436 = vadd.f32 %v435, %v415
    %v437 = vadd.f32 %v436, %v420
    %v438 = vadd.f32 %v437, %v423
    %v439 = vadd.f32 %v438, %v428
    %v440 = vadd.f32 %v439, %v431
    %v441 = vrot.slane %v440, 4
    %v442 = vadd.f32 %v440, %v441
    %v443 = vrot.slane %v442, 2
    %v444 = vadd.f32 %v442, %v443
    %v445 = vrot.slane %v444, 1
    %v446 = vadd.f32 %v444, %v445
    %v447 = vmul.f32 %v446, %v210
    %v448 = vsub.f32 %v404, %v447
    %v449 = vsub.f32 %v407, %v447
    %v450 = vsub.f32 %v412, %v447
    %v451 = vsub.f32 %v415, %v447
    %v452 = vsub.f32 %v420, %v447
    %v453 = vsub.f32 %v423, %v447
    %v454 = vsub.f32 %v428, %v447
    %v455 = vsub.f32 %v431, %v447
    %v456 = vmul.f32 %v448, %v448
    %v457 = vmul.f32 %v449, %v449
    %v458 = vmul.f32 %v450, %v450
    %v459 = vmul.f32 %v451, %v451
    %v460 = vmul.f32 %v452, %v452
    %v461 = vmul.f32 %v453, %v453
    %v462 = vmul.f32 %v454, %v454
    %v463 = vmul.f32 %v455, %v455
    %v464 = vadd.f32 %v456, %v457
    %v465 = vadd.f32 %v464, %v458
    %v466 = vadd.f32 %v465, %v459
    %v467 = vadd.f32 %v466, %v460
    %v468 = vadd.f32 %v467, %v461
    %v469 = vadd.f32 %v468, %v462
    %v470 = vadd.f32 %v469, %v463
    %v471 = vrot.slane %v470, 4
    %v472 = vadd.f32 %v470, %v471
    %v473 = vrot.slane %v472, 2
    %v474 = vadd.f32 %v472, %v473
    %v475 = vrot.slane %v474, 1
    %v476 = vadd.f32 %v474, %v475
    %v477 = vmul.f32 %v476, %v210
    %v478 = vadd.f32 %v477, 1e-05
    %v479 = vrsqrt.pop %v478
    %v480 = vld [vmem:[%s1 + $0x1] sm:$0x1]
    %v481 = vmul.f32 %v480, %v479
    %v483 = vlaneseq
    %v484 = vshrl.u32 %v483, 7
    %v485 = vsub.s32 0, %v484
    %v486 = vrot.slane %v481, %v485
    %v488 = vmul.f32 %v448, %v486
    %v489 = vmul.f32 %v449, %v486
    %v490 = vmul.f32 %v450, %v486
    %v491 = vmul.f32 %v451, %v486
    %v492 = vmul.f32 %v452, %v486
    %v493 = vmul.f32 %v453, %v486
    %v494 = vmul.f32 %v454, %v486
    %v495 = vmul.f32 %v455, %v486
    %v496 = vld [vmem:[%s2 + $0x1] sm:$0x1]
    %v498 = vlaneseq
    %v499 = vshrl.u32 %v498, 7
    %v500 = vsub.s32 0, %v499
    %v501 = vrot.slane %v496, %v500
    %v503 = vadd.f32 %v488, %v501
    %v504 = vadd.f32 %v489, %v501
    %v505 = vadd.f32 %v490, %v501
    %v506 = vadd.f32 %v491, %v501
    %v507 = vadd.f32 %v492, %v501
    %v508 = vadd.f32 %v493, %v501
    %v509 = vadd.f32 %v494, %v501
    %v510 = vadd.f32 %v495, %v501
    %v511 = vmax.f32 %v503, 0.0
    %v512 = vmax.f32 %v504, 0.0
    %v513 = vmax.f32 %v505, 0.0
    %v514 = vmax.f32 %v506, 0.0
    %v515 = vmax.f32 %v507, 0.0
    %v516 = vmax.f32 %v508, 0.0
    %v517 = vmax.f32 %v509, 0.0
    %v518 = vmax.f32 %v510, 0.0
    %v519 = vpack.c.bf16 %v512, %v511
    %v520 = vpack.c.bf16 %v514, %v513
    %v521 = vpack.c.bf16 %v516, %v515
    %v522 = vpack.c.bf16 %v518, %v517
    %523 = vst [vmem:[#allocation2 + $0x8] sm:$0xff] %v519
    %524 = vst [vmem:[#allocation2 + $0x18] sm:$0xff] %v520
    %525 = vst [vmem:[#allocation2 + $0x28] sm:$0xff] %v521
    %526 = vst [vmem:[#allocation2 + $0x38] sm:$0xff] %v522
    %s527 = sshll.u32 %s51, 4
    %528 = dma.done %s293, %s527
    %s529 = scalar_lea.hbm %s6, 2048
    %s530 = scalar_lea.vmem [#allocation5], 128
    %s531 = scalar_lea.sflag [#allocation7], 3
    // Predicated region
    $region38: #{tpu_custom_call.1} parent=1 // pred_check
      _
    $region39: #{tpu_custom_call.1} parent=1 // pred_check_branch
      %533 = sbr.rel target = $region41
    $region40: #{tpu_custom_call.1} parent=1 // pred_region
      %534 = sst [smem:[#allocation14]] [#allocation21]
      %535 = sst [smem:[#allocation15]] [#allocation20]
    $region41: #{tpu_custom_call.1} parent=1 // pred_fallthru
      _
    %537 = shalt.err (0)
    %s539 = sshll.u32 %s530, 4
    %s540 = int_to_ptr.vmem [resolvable:$true] %s539
    %542 = dma.hbm_to_vmem [thread:$0]  %s529, 2048, %s540, %s531
    %v543 = vld [vmem:[#allocation2] sm:$0xff]
    %v544 = vld [vmem:[#allocation2 + $0x8] sm:$0xff]
    %v545 = vld [vmem:[#allocation2 + $0x10] sm:$0xff]
    %v546 = vld [vmem:[#allocation2 + $0x18] sm:$0xff]
    %v547 = vld [vmem:[#allocation2 + $0x20] sm:$0xff]
    %v548 = vld [vmem:[#allocation2 + $0x28] sm:$0xff]
    %v549 = vld [vmem:[#allocation2 + $0x30] sm:$0xff]
    %v550 = vld [vmem:[#allocation2 + $0x38] sm:$0xff]
    %v551 = vld [vmem:[#allocation5] sm:$0xff]
    %v552 = vld [vmem:[#allocation5 + $0x8] sm:$0xff]
    %v553 = vld [vmem:[#allocation5 + $0x10] sm:$0xff]
    %v554 = vld [vmem:[#allocation5 + $0x18] sm:$0xff]
    %v555 = vld [vmem:[#allocation5 + $0x20] sm:$0xff]
    %v556 = vld [vmem:[#allocation5 + $0x28] sm:$0xff]
    %v557 = vld [vmem:[#allocation5 + $0x30] sm:$0xff]
    %v558 = vld [vmem:[#allocation5 + $0x38] sm:$0xff]
    %v559 = vld [vmem:[#allocation5 + $0x40] sm:$0xff]
    %v560 = vld [vmem:[#allocation5 + $0x48] sm:$0xff]
    %v561 = vld [vmem:[#allocation5 + $0x50] sm:$0xff]
    %v562 = vld [vmem:[#allocation5 + $0x58] sm:$0xff]
    %v563 = vld [vmem:[#allocation5 + $0x60] sm:$0xff]
    %v564 = vld [vmem:[#allocation5 + $0x68] sm:$0xff]
    %v565 = vld [vmem:[#allocation5 + $0x70] sm:$0xff]
    %v566 = vld [vmem:[#allocation5 + $0x78] sm:$0xff]
    %567 = vmatprep.subr.bf16.mxu0 0
    %568 = vmatpush1.bf16.msra.mxu0 %v551
    %569 = vmatprep.subr.bf16.mxu0 0
    %570 = vmatpush1.bf16.msra.mxu0 %v552
    %571 = vmatprep.subr.bf16.mxu0 0
    %572 = vmatpush1.bf16.msra.mxu0 %v553
    %573 = vmatprep.subr.bf16.mxu0 0
    %574 = vmatpush1.bf16.msra.mxu0 %v554
    %575 = vmatprep.subr.bf16.mxu0 0
    %576 = vmatpush1.bf16.msra.mxu0 %v555
    %577 = vmatprep.subr.bf16.mxu0 0
    %578 = vmatpush1.bf16.msra.mxu0 %v556
    %579 = vmatprep.subr.bf16.mxu0 0
    %580 = vmatpush1.bf16.msra.mxu0 %v557
    %581 = vmatprep.subr.bf16.mxu0 0
    %582 = vmatpush1.bf16.msra.mxu0 %v558
    %583 = vmatprep.subr.bf16.mxu0 0
    %584 = vmatpush1.bf16.msra.mxu0 %v559
    %585 = vmatprep.subr.bf16.mxu0 0
    %586 = vmatpush1.bf16.msra.mxu0 %v560
    %587 = vmatprep.subr.bf16.mxu0 0
    %588 = vmatpush1.bf16.msra.mxu0 %v561
    %589 = vmatprep.subr.bf16.mxu0 0
    %590 = vmatpush1.bf16.msra.mxu0 %v562
    %591 = vmatprep.subr.bf16.mxu0 0
    %592 = vmatpush1.bf16.msra.mxu0 %v563
    %593 = vmatprep.subr.bf16.mxu0 0
    %594 = vmatpush1.bf16.msra.mxu0 %v564
    %595 = vmatprep.subr.bf16.mxu0 0
    %596 = vmatpush1.bf16.msra.mxu0 %v565
    %597 = vmatprep.subr.bf16.mxu0 0
    %598 = vmatpush1.bf16.msra.mxu0 %v566
    %599 = vmatprep.mubr.bf16.mxu0 %v544
    %600 = vmatmul.mubr.bf16.gmra.mrb[0].mxu0 %v543
    %v601 = vpop.f32.mrb[0].mxu0
    %v602 = vadd.f32 0.0, %v601
    %v603 = vpop.f32.mrb[0].mxu0
    %v604 = vpop.f32.mrb[0].mxu0
    %v605 = vadd.f32 0.0, %v604
    %v606 = vpop.f32.mrb[0].mxu0
    %607 = vmatprep.mubr.bf16.mxu0 %v546
    %608 = vmatmul.mubr.bf16.gmra.mrb[0].mxu0 %v545
    %v609 = vpop.f32.mrb[0].mxu0
    %v610 = vadd.f32 0.0, %v609
    %v611 = vpop.f32.mrb[0].mxu0
    %v612 = vpop.f32.mrb[0].mxu0
    %v613 = vadd.f32 0.0, %v612
    %v614 = vpop.f32.mrb[0].mxu0
    %615 = vmatprep.mubr.bf16.mxu0 %v548
    %616 = vmatmul.mubr.bf16.gmra.mrb[0].mxu0 %v547
    %v617 = vpop.f32.mrb[0].mxu0
    %v618 = vadd.f32 0.0, %v617
    %v619 = vpop.f32.mrb[0].mxu0
    %v620 = vpop.f32.mrb[0].mxu0
    %v621 = vadd.f32 0.0, %v620
    %v622 = vpop.f32.mrb[0].mxu0
    %623 = vmatprep.mubr.bf16.mxu0 %v550
    %624 = vmatmul.mubr.bf16.gmra.mrb[0].mxu0 %v549
    %v625 = vpop.f32.mrb[0].mxu0
    %v626 = vadd.f32 0.0, %v625
    %v627 = vpop.f32.mrb[0].mxu0
    %v628 = vpop.f32.mrb[0].mxu0
    %v629 = vadd.f32 0.0, %v628
    %v630 = vpop.f32.mrb[0].mxu0
    %631 = vdwg.mxu0
    %v632 = vadd.f32 %v602, %v605
    %v633 = vadd.f32 %v632, %v610
    %v634 = vadd.f32 %v633, %v613
    %v635 = vadd.f32 %v634, %v618
    %v636 = vadd.f32 %v635, %v621
    %v637 = vadd.f32 %v636, %v626
    %v638 = vadd.f32 %v637, %v629
    %v639 = vrot.slane %v638, 4
    %v640 = vadd.f32 %v638, %v639
    %v641 = vrot.slane %v640, 2
    %v642 = vadd.f32 %v640, %v641
    %v643 = vrot.slane %v642, 1
    %v644 = vadd.f32 %v642, %v643
    %v645 = vmul.f32 %v644, %v210
    %v646 = vsub.f32 %v602, %v645
    %v647 = vsub.f32 %v605, %v645
    %v648 = vsub.f32 %v610, %v645
    %v649 = vsub.f32 %v613, %v645
    %v650 = vsub.f32 %v618, %v645
    %v651 = vsub.f32 %v621, %v645
    %v652 = vsub.f32 %v626, %v645
    %v653 = vsub.f32 %v629, %v645
    %v654 = vmul.f32 %v646, %v646
    %v655 = vmul.f32 %v647, %v647
    %v656 = vmul.f32 %v648, %v648
    %v657 = vmul.f32 %v649, %v649
    %v658 = vmul.f32 %v650, %v650
    %v659 = vmul.f32 %v651, %v651
    %v660 = vmul.f32 %v652, %v652
    %v661 = vmul.f32 %v653, %v653
    %v662 = vadd.f32 %v654, %v655
    %v663 = vadd.f32 %v662, %v656
    %v664 = vadd.f32 %v663, %v657
    %v665 = vadd.f32 %v664, %v658
    %v666 = vadd.f32 %v665, %v659
    %v667 = vadd.f32 %v666, %v660
    %v668 = vadd.f32 %v667, %v661
    %v669 = vrot.slane %v668, 4
    %v670 = vadd.f32 %v668, %v669
    %v671 = vrot.slane %v670, 2
    %v672 = vadd.f32 %v670, %v671
    %v673 = vrot.slane %v672, 1
    %v674 = vadd.f32 %v672, %v673
    %v675 = vmul.f32 %v674, %v210
    %v676 = vadd.f32 %v675, 1e-05
    %v677 = vrsqrt.pop %v676
    %v678 = vld [vmem:[%s3] sm:$0x1]
    %v679 = vmul.f32 %v678, %v677
    %v681 = vlaneseq
    %v682 = vshrl.u32 %v681, 7
    %v683 = vsub.s32 0, %v682
    %v684 = vrot.slane %v679, %v683
    %v686 = vmul.f32 %v646, %v684
    %v687 = vmul.f32 %v647, %v684
    %v688 = vmul.f32 %v648, %v684
    %v689 = vmul.f32 %v649, %v684
    %v690 = vmul.f32 %v650, %v684
    %v691 = vmul.f32 %v651, %v684
    %v692 = vmul.f32 %v652, %v684
    %v693 = vmul.f32 %v653, %v684
    %v694 = vld [vmem:[%s4] sm:$0x1]
    %v696 = vlaneseq
    %v697 = vshrl.u32 %v696, 7
    %v698 = vsub.s32 0, %v697
    %v699 = vrot.slane %v694, %v698
    %v701 = vadd.f32 %v686, %v699
    %v702 = vadd.f32 %v687, %v699
    %v703 = vadd.f32 %v688, %v699
    %v704 = vadd.f32 %v689, %v699
    %v705 = vadd.f32 %v690, %v699
    %v706 = vadd.f32 %v691, %v699
    %v707 = vadd.f32 %v692, %v699
    %v708 = vadd.f32 %v693, %v699
    %v709 = vmax.f32 %v701, 0.0
    %v710 = vmax.f32 %v702, 0.0
    %v711 = vmax.f32 %v703, 0.0
    %v712 = vmax.f32 %v704, 0.0
    %v713 = vmax.f32 %v705, 0.0
    %v714 = vmax.f32 %v706, 0.0
    %v715 = vmax.f32 %v707, 0.0
    %v716 = vmax.f32 %v708, 0.0
    %v717 = vpack.c.bf16 %v710, %v709
    %v718 = vpack.c.bf16 %v712, %v711
    %v719 = vpack.c.bf16 %v714, %v713
    %v720 = vpack.c.bf16 %v716, %v715
    %721 = vst [vmem:[#allocation3] sm:$0xff] %v717
    %722 = vst [vmem:[#allocation3 + $0x10] sm:$0xff] %v718
    %723 = vst [vmem:[#allocation3 + $0x20] sm:$0xff] %v719
    %724 = vst [vmem:[#allocation3 + $0x30] sm:$0xff] %v720
    %s725 = sshll.u32 %s51, 4
    %726 = dma.done %s531, %s725
    %s727 = scalar_lea.sflag [#allocation7], 4
    // Predicated region
    $region42: #{tpu_custom_call.1} parent=1 // pred_check
      _
    $region43: #{tpu_custom_call.1} parent=1 // pred_check_branch
      %729 = sbr.rel target = $region45
    $region44: #{tpu_custom_call.1} parent=1 // pred_region
      %730 = sst [smem:[#allocation14]] [#allocation23]
      %731 = sst [smem:[#allocation15]] [#allocation22]
    $region45: #{tpu_custom_call.1} parent=1 // pred_fallthru
      _
    %733 = shalt.err (0)
    %s735 = sshll.u32 [#allocation6], 4
    %s736 = int_to_ptr.vmem [resolvable:$true] %s735
    %738 = dma.hbm_to_vmem [thread:$0]  %s7, 2048, %s736, %s727
    %v739 = vld [vmem:[#allocation2] sm:$0xff]
    %v740 = vld [vmem:[#allocation2 + $0x8] sm:$0xff]
    %v741 = vld [vmem:[#allocation2 + $0x10] sm:$0xff]
    %v742 = vld [vmem:[#allocation2 + $0x18] sm:$0xff]
    %v743 = vld [vmem:[#allocation2 + $0x20] sm:$0xff]
    %v744 = vld [vmem:[#allocation2 + $0x28] sm:$0xff]
    %v745 = vld [vmem:[#allocation2 + $0x30] sm:$0xff]
    %v746 = vld [vmem:[#allocation2 + $0x38] sm:$0xff]
    %v747 = vld [vmem:[%s530] sm:$0xff]
    %v748 = vld [vmem:[%s530 + $0x8] sm:$0xff]
    %v749 = vld [vmem:[%s530 + $0x10] sm:$0xff]
    %v750 = vld [vmem:[%s530 + $0x18] sm:$0xff]
    %v751 = vld [vmem:[%s530 + $0x20] sm:$0xff]
    %v752 = vld [vmem:[%s530 + $0x28] sm:$0xff]
    %v753 = vld [vmem:[%s530 + $0x30] sm:$0xff]
    %v754 = vld [vmem:[%s530 + $0x38] sm:$0xff]
    %v755 = vld [vmem:[%s530 + $0x40] sm:$0xff]
    %v756 = vld [vmem:[%s530 + $0x48] sm:$0xff]
    %v757 = vld [vmem:[%s530 + $0x50] sm:$0xff]
    %v758 = vld [vmem:[%s530 + $0x58] sm:$0xff]
    %v759 = vld [vmem:[%s530 + $0x60] sm:$0xff]
    %v760 = vld [vmem:[%s530 + $0x68] sm:$0xff]
    %v761 = vld [vmem:[%s530 + $0x70] sm:$0xff]
    %v762 = vld [vmem:[%s530 + $0x78] sm:$0xff]
    %763 = vmatprep.subr.bf16.mxu0 0
    %764 = vmatpush1.bf16.msra.mxu0 %v747
    %765 = vmatprep.subr.bf16.mxu0 0
    %766 = vmatpush1.bf16.msra.mxu0 %v748
    %767 = vmatprep.subr.bf16.mxu0 0
    %768 = vmatpush1.bf16.msra.mxu0 %v749
    %769 = vmatprep.subr.bf16.mxu0 0
    %770 = vmatpush1.bf16.msra.mxu0 %v750
    %771 = vmatprep.subr.bf16.mxu0 0
    %772 = vmatpush1.bf16.msra.mxu0 %v751
    %773 = vmatprep.subr.bf16.mxu0 0
    %774 = vmatpush1.bf16.msra.mxu0 %v752
    %775 = vmatprep.subr.bf16.mxu0 0
    %776 = vmatpush1.bf16.msra.mxu0 %v753
    %777 = vmatprep.subr.bf16.mxu0 0
    %778 = vmatpush1.bf16.msra.mxu0 %v754
    %779 = vmatprep.subr.bf16.mxu0 0
    %780 = vmatpush1.bf16.msra.mxu0 %v755
    %781 = vmatprep.subr.bf16.mxu0 0
    %782 = vmatpush1.bf16.msra.mxu0 %v756
    %783 = vmatprep.subr.bf16.mxu0 0
    %784 = vmatpush1.bf16.msra.mxu0 %v757
    %785 = vmatprep.subr.bf16.mxu0 0
    %786 = vmatpush1.bf16.msra.mxu0 %v758
    %787 = vmatprep.subr.bf16.mxu0 0
    %788 = vmatpush1.bf16.msra.mxu0 %v759
    %789 = vmatprep.subr.bf16.mxu0 0
    %790 = vmatpush1.bf16.msra.mxu0 %v760
    %791 = vmatprep.subr.bf16.mxu0 0
    %792 = vmatpush1.bf16.msra.mxu0 %v761
    %793 = vmatprep.subr.bf16.mxu0 0
    %794 = vmatpush1.bf16.msra.mxu0 %v762
    %795 = vmatprep.mubr.bf16.mxu0 %v740
    %796 = vmatmul.mubr.bf16.gmra.mrb[0].mxu0 %v739
    %v797 = vpop.f32.mrb[0].mxu0
    %v798 = vadd.f32 0.0, %v797
    %v799 = vpop.f32.mrb[0].mxu0
    %v800 = vpop.f32.mrb[0].mxu0
    %v801 = vadd.f32 0.0, %v800
    %v802 = vpop.f32.mrb[0].mxu0
    %803 = vmatprep.mubr.bf16.mxu0 %v742
    %804 = vmatmul.mubr.bf16.gmra.mrb[0].mxu0 %v741
    %v805 = vpop.f32.mrb[0].mxu0
    %v806 = vadd.f32 0.0, %v805
    %v807 = vpop.f32.mrb[0].mxu0
    %v808 = vpop.f32.mrb[0].mxu0
    %v809 = vadd.f32 0.0, %v808
    %v810 = vpop.f32.mrb[0].mxu0
    %811 = vmatprep.mubr.bf16.mxu0 %v744
    %812 = vmatmul.mubr.bf16.gmra.mrb[0].mxu0 %v743
    %v813 = vpop.f32.mrb[0].mxu0
    %v814 = vadd.f32 0.0, %v813
    %v815 = vpop.f32.mrb[0].mxu0
    %v816 = vpop.f32.mrb[0].mxu0
    %v817 = vadd.f32 0.0, %v816
    %v818 = vpop.f32.mrb[0].mxu0
    %819 = vmatprep.mubr.bf16.mxu0 %v746
    %820 = vmatmul.mubr.bf16.gmra.mrb[0].mxu0 %v745
    %v821 = vpop.f32.mrb[0].mxu0
    %v822 = vadd.f32 0.0, %v821
    %v823 = vpop.f32.mrb[0].mxu0
    %v824 = vpop.f32.mrb[0].mxu0
    %v825 = vadd.f32 0.0, %v824
    %v826 = vpop.f32.mrb[0].mxu0
    %827 = vdwg.mxu0
    %v828 = vadd.f32 %v798, %v801
    %v829 = vadd.f32 %v828, %v806
    %v830 = vadd.f32 %v829, %v809
    %v831 = vadd.f32 %v830, %v814
    %v832 = vadd.f32 %v831, %v817
    %v833 = vadd.f32 %v832, %v822
    %v834 = vadd.f32 %v833, %v825
    %v835 = vrot.slane %v834, 4
    %v836 = vadd.f32 %v834, %v835
    %v837 = vrot.slane %v836, 2
    %v838 = vadd.f32 %v836, %v837
    %v839 = vrot.slane %v838, 1
    %v840 = vadd.f32 %v838, %v839
    %v841 = vmul.f32 %v840, %v210
    %v842 = vsub.f32 %v798, %v841
    %v843 = vsub.f32 %v801, %v841
    %v844 = vsub.f32 %v806, %v841
    %v845 = vsub.f32 %v809, %v841
    %v846 = vsub.f32 %v814, %v841
    %v847 = vsub.f32 %v817, %v841
    %v848 = vsub.f32 %v822, %v841
    %v849 = vsub.f32 %v825, %v841
    %v850 = vmul.f32 %v842, %v842
    %v851 = vmul.f32 %v843, %v843
    %v852 = vmul.f32 %v844, %v844
    %v853 = vmul.f32 %v845, %v845
    %v854 = vmul.f32 %v846, %v846
    %v855 = vmul.f32 %v847, %v847
    %v856 = vmul.f32 %v848, %v848
    %v857 = vmul.f32 %v849, %v849
    %v858 = vadd.f32 %v850, %v851
    %v859 = vadd.f32 %v858, %v852
    %v860 = vadd.f32 %v859, %v853
    %v861 = vadd.f32 %v860, %v854
    %v862 = vadd.f32 %v861, %v855
    %v863 = vadd.f32 %v862, %v856
    %v864 = vadd.f32 %v863, %v857
    %v865 = vrot.slane %v864, 4
    %v866 = vadd.f32 %v864, %v865
    %v867 = vrot.slane %v866, 2
    %v868 = vadd.f32 %v866, %v867
    %v869 = vrot.slane %v868, 1
    %v870 = vadd.f32 %v868, %v869
    %v871 = vmul.f32 %v870, %v210
    %v872 = vadd.f32 %v871, 1e-05
    %v873 = vrsqrt.pop %v872
    %v874 = vld [vmem:[%s3 + $0x1] sm:$0x1]
    %v875 = vmul.f32 %v874, %v873
    %v877 = vlaneseq
    %v878 = vshrl.u32 %v877, 7
    %v879 = vsub.s32 0, %v878
    %v880 = vrot.slane %v875, %v879
    %v882 = vmul.f32 %v842, %v880
    %v883 = vmul.f32 %v843, %v880
    %v884 = vmul.f32 %v844, %v880
    %v885 = vmul.f32 %v845, %v880
    %v886 = vmul.f32 %v846, %v880
    %v887 = vmul.f32 %v847, %v880
    %v888 = vmul.f32 %v848, %v880
    %v889 = vmul.f32 %v849, %v880
    %v890 = vld [vmem:[%s4 + $0x1] sm:$0x1]
    %v892 = vlaneseq
    %v893 = vshrl.u32 %v892, 7
    %v894 = vsub.s32 0, %v893
    %v895 = vrot.slane %v890, %v894
    %v897 = vadd.f32 %v882, %v895
    %v898 = vadd.f32 %v883, %v895
    %v899 = vadd.f32 %v884, %v895
    %v900 = vadd.f32 %v885, %v895
    %v901 = vadd.f32 %v886, %v895
    %v902 = vadd.f32 %v887, %v895
    %v903 = vadd.f32 %v888, %v895
    %v904 = vadd.f32 %v889, %v895
    %v905 = vmax.f32 %v897, 0.0
    %v906 = vmax.f32 %v898, 0.0
    %v907 = vmax.f32 %v899, 0.0
    %v908 = vmax.f32 %v900, 0.0
    %v909 = vmax.f32 %v901, 0.0
    %v910 = vmax.f32 %v902, 0.0
    %v911 = vmax.f32 %v903, 0.0
    %v912 = vmax.f32 %v904, 0.0
    %v913 = vpack.c.bf16 %v906, %v905
    %v914 = vpack.c.bf16 %v908, %v907
    %v915 = vpack.c.bf16 %v910, %v909
    %v916 = vpack.c.bf16 %v912, %v911
    %917 = vst [vmem:[#allocation3 + $0x8] sm:$0xff] %v913
    %918 = vst [vmem:[#allocation3 + $0x18] sm:$0xff] %v914
    %919 = vst [vmem:[#allocation3 + $0x28] sm:$0xff] %v915
    %920 = vst [vmem:[#allocation3 + $0x38] sm:$0xff] %v916
    %s921 = sshll.u32 %s51, 4
    %922 = dma.done %s727, %s921
    %s923 = scalar_lea.hbm %s7, 2048
    %s924 = scalar_lea.vmem [#allocation6], 128
    %s925 = scalar_lea.sflag [#allocation7], 5
    // Predicated region
    $region46: #{tpu_custom_call.1} parent=1 // pred_check
      _
    $region47: #{tpu_custom_call.1} parent=1 // pred_check_branch
      %927 = sbr.rel target = $region49
    $region48: #{tpu_custom_call.1} parent=1 // pred_region
      %928 = sst [smem:[#allocation14]] [#allocation25]
      %929 = sst [smem:[#allocation15]] [#allocation24]
    $region49: #{tpu_custom_call.1} parent=1 // pred_fallthru
      _
    %931 = shalt.err (0)
    %s933 = sshll.u32 %s924, 4
    %s934 = int_to_ptr.vmem [resolvable:$true] %s933
    %936 = dma.hbm_to_vmem [thread:$0]  %s923, 2048, %s934, %s925
    %v937 = vld [vmem:[#allocation3] sm:$0xff]
    %v938 = vld [vmem:[#allocation3 + $0x8] sm:$0xff]
    %v939 = vld [vmem:[#allocation3 + $0x10] sm:$0xff]
    %v940 = vld [vmem:[#allocation3 + $0x18] sm:$0xff]
    %v941 = vld [vmem:[#allocation3 + $0x20] sm:$0xff]
    %v942 = vld [vmem:[#allocation3 + $0x28] sm:$0xff]
    %v943 = vld [vmem:[#allocation3 + $0x30] sm:$0xff]
    %v944 = vld [vmem:[#allocation3 + $0x38] sm:$0xff]
    %v945 = vld [vmem:[#allocation6] sm:$0xff]
    %v946 = vld [vmem:[#allocation6 + $0x8] sm:$0xff]
    %v947 = vld [vmem:[#allocation6 + $0x10] sm:$0xff]
    %v948 = vld [vmem:[#allocation6 + $0x18] sm:$0xff]
    %v949 = vld [vmem:[#allocation6 + $0x20] sm:$0xff]
    %v950 = vld [vmem:[#allocation6 + $0x28] sm:$0xff]
    %v951 = vld [vmem:[#allocation6 + $0x30] sm:$0xff]
    %v952 = vld [vmem:[#allocation6 + $0x38] sm:$0xff]
    %v953 = vld [vmem:[#allocation6 + $0x40] sm:$0xff]
    %v954 = vld [vmem:[#allocation6 + $0x48] sm:$0xff]
    %v955 = vld [vmem:[#allocation6 + $0x50] sm:$0xff]
    %v956 = vld [vmem:[#allocation6 + $0x58] sm:$0xff]
    %v957 = vld [vmem:[#allocation6 + $0x60] sm:$0xff]
    %v958 = vld [vmem:[#allocation6 + $0x68] sm:$0xff]
    %v959 = vld [vmem:[#allocation6 + $0x70] sm:$0xff]
    %v960 = vld [vmem:[#allocation6 + $0x78] sm:$0xff]
    %961 = vmatprep.subr.bf16.mxu0 0
    %962 = vmatpush1.bf16.msra.mxu0 %v945
    %963 = vmatprep.subr.bf16.mxu0 0
    %964 = vmatpush1.bf16.msra.mxu0 %v946
    %965 = vmatprep.subr.bf16.mxu0 0
    %966 = vmatpush1.bf16.msra.mxu0 %v947
    %967 = vmatprep.subr.bf16.mxu0 0
    %968 = vmatpush1.bf16.msra.mxu0 %v948
    %969 = vmatprep.subr.bf16.mxu0 0
    %970 = vmatpush1.bf16.msra.mxu0 %v949
    %971 = vmatprep.subr.bf16.mxu0 0
    %972 = vmatpush1.bf16.msra.mxu0 %v950
    %973 = vmatprep.subr.bf16.mxu0 0
    %974 = vmatpush1.bf16.msra.mxu0 %v951
    %975 = vmatprep.subr.bf16.mxu0 0
    %976 = vmatpush1.bf16.msra.mxu0 %v952
    %977 = vmatprep.subr.bf16.mxu0 0
    %978 = vmatpush1.bf16.msra.mxu0 %v953
    %979 = vmatprep.subr.bf16.mxu0 0
    %980 = vmatpush1.bf16.msra.mxu0 %v954
    %981 = vmatprep.subr.bf16.mxu0 0
    %982 = vmatpush1.bf16.msra.mxu0 %v955
    %983 = vmatprep.subr.bf16.mxu0 0
    %984 = vmatpush1.bf16.msra.mxu0 %v956
    %985 = vmatprep.subr.bf16.mxu0 0
    %986 = vmatpush1.bf16.msra.mxu0 %v957
    %987 = vmatprep.subr.bf16.mxu0 0
    %988 = vmatpush1.bf16.msra.mxu0 %v958
    %989 = vmatprep.subr.bf16.mxu0 0
    %990 = vmatpush1.bf16.msra.mxu0 %v959
    %991 = vmatprep.subr.bf16.mxu0 0
    %992 = vmatpush1.bf16.msra.mxu0 %v960
    %993 = vmatprep.mubr.bf16.mxu0 %v938
    %994 = vmatmul.mubr.bf16.gmra.mrb[0].mxu0 %v937
    %v995 = vpop.f32.mrb[0].mxu0
    %v996 = vadd.f32 0.0, %v995
    %v997 = vpop.f32.mrb[0].mxu0
    %v998 = vpop.f32.mrb[0].mxu0
    %v999 = vadd.f32 0.0, %v998
    %v1000 = vpop.f32.mrb[0].mxu0
    %1001 = vmatprep.mubr.bf16.mxu0 %v940
    %1002 = vmatmul.mubr.bf16.gmra.mrb[0].mxu0 %v939
    %v1003 = vpop.f32.mrb[0].mxu0
    %v1004 = vadd.f32 0.0, %v1003
    %v1005 = vpop.f32.mrb[0].mxu0
    %v1006 = vpop.f32.mrb[0].mxu0
    %v1007 = vadd.f32 0.0, %v1006
    %v1008 = vpop.f32.mrb[0].mxu0
    %1009 = vmatprep.mubr.bf16.mxu0 %v942
    %1010 = vmatmul.mubr.bf16.gmra.mrb[0].mxu0 %v941
    %v1011 = vpop.f32.mrb[0].mxu0
    %v1012 = vadd.f32 0.0, %v1011
    %v1013 = vpop.f32.mrb[0].mxu0
    %v1014 = vpop.f32.mrb[0].mxu0
    %v1015 = vadd.f32 0.0, %v1014
    %v1016 = vpop.f32.mrb[0].mxu0
    %1017 = vmatprep.mubr.bf16.mxu0 %v944
    %1018 = vmatmul.mubr.bf16.gmra.mrb[0].mxu0 %v943
    %v1019 = vpop.f32.mrb[0].mxu0
    %v1020 = vadd.f32 0.0, %v1019
    %v1021 = vpop.f32.mrb[0].mxu0
    %v1022 = vpop.f32.mrb[0].mxu0
    %v1023 = vadd.f32 0.0, %v1022
    %v1024 = vpop.f32.mrb[0].mxu0
    %1025 = vdwg.mxu0
    %v1026 = vadd.f32 %v996, %v999
    %v1027 = vadd.f32 %v1026, %v1004
    %v1028 = vadd.f32 %v1027, %v1007
    %v1029 = vadd.f32 %v1028, %v1012
    %v1030 = vadd.f32 %v1029, %v1015
    %v1031 = vadd.f32 %v1030, %v1020
    %v1032 = vadd.f32 %v1031, %v1023
    %v1033 = vrot.slane %v1032, 4
    %v1034 = vadd.f32 %v1032, %v1033
    %v1035 = vrot.slane %v1034, 2
    %v1036 = vadd.f32 %v1034, %v1035
    %v1037 = vrot.slane %v1036, 1
    %v1038 = vadd.f32 %v1036, %v1037
    %v1039 = vmul.f32 %v1038, %v210
    %v1040 = vsub.f32 %v996, %v1039
    %v1041 = vsub.f32 %v999, %v1039
    %v1042 = vsub.f32 %v1004, %v1039
    %v1043 = vsub.f32 %v1007, %v1039
    %v1044 = vsub.f32 %v1012, %v1039
    %v1045 = vsub.f32 %v1015, %v1039
    %v1046 = vsub.f32 %v1020, %v1039
    %v1047 = vsub.f32 %v1023, %v1039
    %v1048 = vmul.f32 %v1040, %v1040
    %v1049 = vmul.f32 %v1041, %v1041
    %v1050 = vmul.f32 %v1042, %v1042
    %v1051 = vmul.f32 %v1043, %v1043
    %v1052 = vmul.f32 %v1044, %v1044
    %v1053 = vmul.f32 %v1045, %v1045
    %v1054 = vmul.f32 %v1046, %v1046
    %v1055 = vmul.f32 %v1047, %v1047
    %v1056 = vadd.f32 %v1048, %v1049
    %v1057 = vadd.f32 %v1056, %v1050
    %v1058 = vadd.f32 %v1057, %v1051
    %v1059 = vadd.f32 %v1058, %v1052
    %v1060 = vadd.f32 %v1059, %v1053
    %v1061 = vadd.f32 %v1060, %v1054
    %v1062 = vadd.f32 %v1061, %v1055
    %v1063 = vrot.slane %v1062, 4
    %v1064 = vadd.f32 %v1062, %v1063
    %v1065 = vrot.slane %v1064, 2
    %v1066 = vadd.f32 %v1064, %v1065
    %v1067 = vrot.slane %v1066, 1
    %v1068 = vadd.f32 %v1066, %v1067
    %v1069 = vmul.f32 %v1068, %v210
    %v1070 = vadd.f32 %v1069, 1e-05
    %v1071 = vrsqrt.pop %v1070
    %v1072 = vmul.f32 %v1040, %v1071
    %v1073 = vmul.f32 %v1041, %v1071
    %v1074 = vmul.f32 %v1042, %v1071
    %v1075 = vmul.f32 %v1043, %v1071
    %v1076 = vmul.f32 %v1044, %v1071
    %v1077 = vmul.f32 %v1045, %v1071
    %v1078 = vmul.f32 %v1046, %v1071
    %v1079 = vmul.f32 %v1047, %v1071
    %1080 = vst [vmem:[#allocation11] sm:$0xff] %v1072
    %1081 = vst [vmem:[#allocation11 + $0x10] sm:$0xff] %v1073
    %1082 = vst [vmem:[#allocation11 + $0x20] sm:$0xff] %v1074
    %1083 = vst [vmem:[#allocation11 + $0x30] sm:$0xff] %v1075
    %1084 = vst [vmem:[#allocation11 + $0x40] sm:$0xff] %v1076
    %1085 = vst [vmem:[#allocation11 + $0x50] sm:$0xff] %v1077
    %1086 = vst [vmem:[#allocation11 + $0x60] sm:$0xff] %v1078
    %1087 = vst [vmem:[#allocation11 + $0x70] sm:$0xff] %v1079
    %s1088 = sshll.u32 %s51, 4
    %1089 = dma.done %s925, %s1088
    %v1090 = vld [vmem:[#allocation3] sm:$0xff]
    %v1091 = vld [vmem:[#allocation3 + $0x8] sm:$0xff]
    %v1092 = vld [vmem:[#allocation3 + $0x10] sm:$0xff]
    %v1093 = vld [vmem:[#allocation3 + $0x18] sm:$0xff]
    %v1094 = vld [vmem:[#allocation3 + $0x20] sm:$0xff]
    %v1095 = vld [vmem:[#allocation3 + $0x28] sm:$0xff]
    %v1096 = vld [vmem:[#allocation3 + $0x30] sm:$0xff]
    %v1097 = vld [vmem:[#allocation3 + $0x38] sm:$0xff]
    %v1098 = vld [vmem:[%s924] sm:$0xff]
    %v1099 = vld [vmem:[%s924 + $0x8] sm:$0xff]
    %v1100 = vld [vmem:[%s924 + $0x10] sm:$0xff]
    %v1101 = vld [vmem:[%s924 + $0x18] sm:$0xff]
    %v1102 = vld [vmem:[%s924 + $0x20] sm:$0xff]
    %v1103 = vld [vmem:[%s924 + $0x28] sm:$0xff]
    %v1104 = vld [vmem:[%s924 + $0x30] sm:$0xff]
    %v1105 = vld [vmem:[%s924 + $0x38] sm:$0xff]
    %v1106 = vld [vmem:[%s924 + $0x40] sm:$0xff]
    %v1107 = vld [vmem:[%s924 + $0x48] sm:$0xff]
    %v1108 = vld [vmem:[%s924 + $0x50] sm:$0xff]
    %v1109 = vld [vmem:[%s924 + $0x58] sm:$0xff]
    %v1110 = vld [vmem:[%s924 + $0x60] sm:$0xff]
    %v1111 = vld [vmem:[%s924 + $0x68] sm:$0xff]
    %v1112 = vld [vmem:[%s924 + $0x70] sm:$0xff]
    %v1113 = vld [vmem:[%s924 + $0x78] sm:$0xff]
    %1114 = vmatprep.subr.bf16.mxu0 0
    %1115 = vmatpush1.bf16.msra.mxu0 %v1098
    %1116 = vmatprep.subr.bf16.mxu0 0
    %1117 = vmatpush1.bf16.msra.mxu0 %v1099
    %1118 = vmatprep.subr.bf16.mxu0 0
    %1119 = vmatpush1.bf16.msra.mxu0 %v1100
    %1120 = vmatprep.subr.bf16.mxu0 0
    %1121 = vmatpush1.bf16.msra.mxu0 %v1101
    %1122 = vmatprep.subr.bf16.mxu0 0
    %1123 = vmatpush1.bf16.msra.mxu0 %v1102
    %1124 = vmatprep.subr.bf16.mxu0 0
    %1125 = vmatpush1.bf16.msra.mxu0 %v1103
    %1126 = vmatprep.subr.bf16.mxu0 0
    %1127 = vmatpush1.bf16.msra.mxu0 %v1104
    %1128 = vmatprep.subr.bf16.mxu0 0
    %1129 = vmatpush1.bf16.msra.mxu0 %v1105
    %1130 = vmatprep.subr.bf16.mxu0 0
    %1131 = vmatpush1.bf16.msra.mxu0 %v1106
    %1132 = vmatprep.subr.bf16.mxu0 0
    %1133 = vmatpush1.bf16.msra.mxu0 %v1107
    %1134 = vmatprep.subr.bf16.mxu0 0
    %1135 = vmatpush1.bf16.msra.mxu0 %v1108
    %1136 = vmatprep.subr.bf16.mxu0 0
    %1137 = vmatpush1.bf16.msra.mxu0 %v1109
    %1138 = vmatprep.subr.bf16.mxu0 0
    %1139 = vmatpush1.bf16.msra.mxu0 %v1110
    %1140 = vmatprep.subr.bf16.mxu0 0
    %1141 = vmatpush1.bf16.msra.mxu0 %v1111
    %1142 = vmatprep.subr.bf16.mxu0 0
    %1143 = vmatpush1.bf16.msra.mxu0 %v1112
    %1144 = vmatprep.subr.bf16.mxu0 0
    %1145 = vmatpush1.bf16.msra.mxu0 %v1113
    %1146 = vmatprep.mubr.bf16.mxu0 %v1091
    %1147 = vmatmul.mubr.bf16.gmra.mrb[0].mxu0 %v1090
    %v1148 = vpop.f32.mrb[0].mxu0
    %v1149 = vadd.f32 0.0, %v1148
    %v1150 = vpop.f32.mrb[0].mxu0
    %v1151 = vpop.f32.mrb[0].mxu0
    %v1152 = vadd.f32 0.0, %v1151
    %v1153 = vpop.f32.mrb[0].mxu0
    %1154 = vmatprep.mubr.bf16.mxu0 %v1093
    %1155 = vmatmul.mubr.bf16.gmra.mrb[0].mxu0 %v1092
    %v1156 = vpop.f32.mrb[0].mxu0
    %v1157 = vadd.f32 0.0, %v1156
    %v1158 = vpop.f32.mrb[0].mxu0
    %v1159 = vpop.f32.mrb[0].mxu0
    %v1160 = vadd.f32 0.0, %v1159
    %v1161 = vpop.f32.mrb[0].mxu0
    %1162 = vmatprep.mubr.bf16.mxu0 %v1095
    %1163 = vmatmul.mubr.bf16.gmra.mrb[0].mxu0 %v1094
    %v1164 = vpop.f32.mrb[0].mxu0
    %v1165 = vadd.f32 0.0, %v1164
    %v1166 = vpop.f32.mrb[0].mxu0
    %v1167 = vpop.f32.mrb[0].mxu0
    %v1168 = vadd.f32 0.0, %v1167
    %v1169 = vpop.f32.mrb[0].mxu0
    %1170 = vmatprep.mubr.bf16.mxu0 %v1097
    %1171 = vmatmul.mubr.bf16.gmra.mrb[0].mxu0 %v1096
    %v1172 = vpop.f32.mrb[0].mxu0
    %v1173 = vadd.f32 0.0, %v1172
    %v1174 = vpop.f32.mrb[0].mxu0
    %v1175 = vpop.f32.mrb[0].mxu0
    %v1176 = vadd.f32 0.0, %v1175
    %v1177 = vpop.f32.mrb[0].mxu0
    %1178 = vdwg.mxu0
    %v1179 = vadd.f32 %v1149, %v1152
    %v1180 = vadd.f32 %v1179, %v1157
    %v1181 = vadd.f32 %v1180, %v1160
    %v1182 = vadd.f32 %v1181, %v1165
    %v1183 = vadd.f32 %v1182, %v1168
    %v1184 = vadd.f32 %v1183, %v1173
    %v1185 = vadd.f32 %v1184, %v1176
    %v1186 = vrot.slane %v1185, 4
    %v1187 = vadd.f32 %v1185, %v1186
    %v1188 = vrot.slane %v1187, 2
    %v1189 = vadd.f32 %v1187, %v1188
    %v1190 = vrot.slane %v1189, 1
    %v1191 = vadd.f32 %v1189, %v1190
    %v1192 = vmul.f32 %v1191, %v210
    %v1193 = vsub.f32 %v1149, %v1192
    %v1194 = vsub.f32 %v1152, %v1192
    %v1195 = vsub.f32 %v1157, %v1192
    %v1196 = vsub.f32 %v1160, %v1192
    %v1197 = vsub.f32 %v1165, %v1192
    %v1198 = vsub.f32 %v1168, %v1192
    %v1199 = vsub.f32 %v1173, %v1192
    %v1200 = vsub.f32 %v1176, %v1192
    %v1201 = vmul.f32 %v1193, %v1193
    %v1202 = vmul.f32 %v1194, %v1194
    %v1203 = vmul.f32 %v1195, %v1195
    %v1204 = vmul.f32 %v1196, %v1196
    %v1205 = vmul.f32 %v1197, %v1197
    %v1206 = vmul.f32 %v1198, %v1198
    %v1207 = vmul.f32 %v1199, %v1199
    %v1208 = vmul.f32 %v1200, %v1200
    %v1209 = vadd.f32 %v1201, %v1202
    %v1210 = vadd.f32 %v1209, %v1203
    %v1211 = vadd.f32 %v1210, %v1204
    %v1212 = vadd.f32 %v1211, %v1205
    %v1213 = vadd.f32 %v1212, %v1206
    %v1214 = vadd.f32 %v1213, %v1207
    %v1215 = vadd.f32 %v1214, %v1208
    %v1216 = vrot.slane %v1215, 4
    %v1217 = vadd.f32 %v1215, %v1216
    %v1218 = vrot.slane %v1217, 2
    %v1219 = vadd.f32 %v1217, %v1218
    %v1220 = vrot.slane %v1219, 1
    %v1221 = vadd.f32 %v1219, %v1220
    %v1222 = vmul.f32 %v1221, %v210
    %v1223 = vadd.f32 %v1222, 1e-05
    %v1224 = vrsqrt.pop %v1223
    %v1225 = vmul.f32 %v1193, %v1224
    %v1226 = vmul.f32 %v1194, %v1224
    %v1227 = vmul.f32 %v1195, %v1224
    %v1228 = vmul.f32 %v1196, %v1224
    %v1229 = vmul.f32 %v1197, %v1224
    %v1230 = vmul.f32 %v1198, %v1224
    %v1231 = vmul.f32 %v1199, %v1224
    %v1232 = vmul.f32 %v1200, %v1224
    %1233 = vst [vmem:[#allocation11 + $0x8] sm:$0xff] %v1225
    %1234 = vst [vmem:[#allocation11 + $0x18] sm:$0xff] %v1226
    %1235 = vst [vmem:[#allocation11 + $0x28] sm:$0xff] %v1227
    %1236 = vst [vmem:[#allocation11 + $0x38] sm:$0xff] %v1228
    %1237 = vst [vmem:[#allocation11 + $0x48] sm:$0xff] %v1229
    %1238 = vst [vmem:[#allocation11 + $0x58] sm:$0xff] %v1230
    %1239 = vst [vmem:[#allocation11 + $0x68] sm:$0xff] %v1231
    %1240 = vst [vmem:[#allocation11 + $0x78] sm:$0xff] %v1232
    // Predicated region
    $region50: #{tpu_custom_call.1} parent=1 // pred_check
      _
    $region51: #{tpu_custom_call.1} parent=1 // pred_check_branch
      %1242 = sbr.rel (0) target = $region53
    $region52: #{tpu_custom_call.1} parent=1 // pred_region
      %s1244 = ssub.s32 2048, 2048
      %1245 = vsyncadd [#allocation10], %s1244
      %s1246 = sshll.u32 [#allocation11], 4
      %s1247 = int_to_ptr.vmem [resolvable:$true] %s1246
      %1252 = dma.vmem_to_hbm [thread:$0]  %s1247, 2048, %s8, [#allocation10], 256, 256, 16
    $region53: #{tpu_custom_call.1} parent=1 // pred_fallthru
      _
    // Predicated region
    $region54: #{tpu_custom_call.1} parent=1 // pred_check
      _
    $region55: #{tpu_custom_call.1} parent=1 // pred_check_branch
      %1254 = sbr.rel (0) target = $region57
    $region56: #{tpu_custom_call.1} parent=1 // pred_region
      %1255 = dma.done [#allocation10], 2048
    $region57: #{tpu_custom_call.1} parent=1 // pred_fallthru
      _
    %1256 = vsyncpa [#allocation9], 1
    %1257 = vsyncpa [#allocation10], 1
  %1258 = vsyncmov [#allocation7]
  %s1259 = vpop.sfrf %1258
  %p1260 = scmp.eq.s32.totalorder %s1259, 0
  %p1261 = pneg %p1260
  %1263 = shalt.err (%p1261)
  %s1264 = scalar_lea.sflag [#allocation7], 1
  %1265 = vsyncmov %s1264
  %s1266 = vpop.sfrf %1265
  %p1267 = scmp.eq.s32.totalorder %s1266, 0
  %p1268 = pneg %p1267
  %1270 = shalt.err (%p1268)
  %s1271 = scalar_lea.sflag [#allocation7], 2
  %1272 = vsyncmov %s1271
  %s1273 = vpop.sfrf %1272
  %p1274 = scmp.eq.s32.totalorder %s1273, 0
  %p1275 = pneg %p1274
  %1277 = shalt.err (%p1275)
  %s1278 = scalar_lea.sflag [#allocation7], 3
  %1279 = vsyncmov %s1278
  %s1280 = vpop.sfrf %1279
  %p1281 = scmp.eq.s32.totalorder %s1280, 0
  %p1282 = pneg %p1281
  %1284 = shalt.err (%p1282)
  %s1285 = scalar_lea.sflag [#allocation7], 4
  %1286 = vsyncmov %s1285
  %s1287 = vpop.sfrf %1286
  %p1288 = scmp.eq.s32.totalorder %s1287, 0
  %p1289 = pneg %p1288
  %1291 = shalt.err (%p1289)
  %s1292 = scalar_lea.sflag [#allocation7], 5
  %1293 = vsyncmov %s1292
  %s1294 = vpop.sfrf %1293
  %p1295 = scmp.eq.s32.totalorder %s1294, 0
  %p1296 = pneg %p1295
  %1298 = shalt.err (%p1296)

</llo_original>
